<compile_context>
chip_gen: v5e
topology: v5e:2x2
jax: 0.10.0
libtpu: 0.0.40
codegen_flags: <defaults>
</compile_context>

<pallas_src>
import functools

import jax
import jax.numpy as jnp
from jax import lax
from jax.experimental import pallas as pl
from jax.experimental.pallas import tpu as pltpu


def _round_up(n, m):
    return ((n + m - 1) // m) * m


def _as_pair(v):
    return tuple(v) if isinstance(v, (tuple, list)) else (v, v)


# --------------------------------------------------------------------------- #
# Pallas kernels: one output band per grid step, single fused-K matmul.
# --------------------------------------------------------------------------- #
def _mask_conv_band_kernel(x_ref, keep_ref, dm_ref, w_ref, b_ref, o_ref, pbuf,
                           *, shifts, cin, lp):
    """Fused masked+full conv via a per-tap {0,1} combine factor.

    x_ref    : (1, 1, Cin_p, Lx)     bf16  padded-input band (flat spatial)
    keep_ref : (1, 1, 1,     Lx)     bf16  ~mask band, values in {0,1}
    dm_ref   : (1, 1, 1,     Lp)     bf16  dmask band (output grid), {0,1}
    w_ref    : (Cout_p, taps*Cin_p)  bf16  weights, K = tap-major x Cin
    b_ref    : (Cout_p, 1)           f32   bias column
    o_ref    : (1, 1, Cout_p, Lp)    f32   output band (pseudo grid, row stride Wp)
    pbuf     : (taps*Cin_p, Lp)      bf16  VMEM im2col staging buffer
    """
    xb = x_ref[0, 0]          # (Cin_p, Lx)
    kb = keep_ref[0, 0]       # (1, Lx)
    dm = dm_ref[0, 0]         # (1, Lp)
    # Static unroll over taps. Tap (dy,dx) of a stride-1 conv is the band
    # shifted by dy*Wp + dx (flat-shift trick). combine = dmask OR keep, so the
    # masked multiply is exact ({0,1} values) and lossless in bf16.
    for t, sh in enumerate(shifts):
        comb = jnp.maximum(dm, kb[:, sh:sh + lp])                  # (1, Lp)
        pbuf[t * cin:(t + 1) * cin, :] = xb[:, sh:sh + lp] * comb  # (Cin_p, Lp)
    o_ref[0, 0] = jnp.dot(w_ref[...], pbuf[...],
                          preferred_element_type=jnp.float32) + b_ref[...]


def _conv_band_kernel(x_ref, w_ref, b_ref, o_ref, pbuf, *, shifts, cin, lp):
    """skip_mask=True: plain conv, no mask inputs / no combine multiply."""
    xb = x_ref[0, 0]
    for t, sh in enumerate(shifts):
        pbuf[t * cin:(t + 1) * cin, :] = xb[:, sh:sh + lp]
    o_ref[0, 0] = jnp.dot(w_ref[...], pbuf[...],
                          preferred_element_type=jnp.float32) + b_ref[...]


# --------------------------------------------------------------------------- #
# XLA fallback (only used for stride != 1)
# --------------------------------------------------------------------------- #
def _xla_mask_conv2d(x, weight, bias, mask, dmask, *, stride, padding, skip_mask):
    # TODO(synk): stride != 1 is not fused into the Pallas flat-shift kernel yet;
    # fall back to two XLA convolutions with the original combine formula.
    sh, sw = _as_pair(stride)
    ph, pw = _as_pair(padding)

    def conv(z):
        y = lax.conv_general_dilated(z, weight, (sh, sw), [(ph, ph), (pw, pw)],
                                     dimension_numbers=("NCHW", "OIHW", "NCHW"))
        return y + bias.reshape(1, -1, 1, 1)

    if skip_mask:
        return conv(x)
    keep = (1.0 - mask.astype(x.dtype))[:, None]
    dm = dmask.astype(x.dtype)[:, None]
    return conv(x) * dm + conv(x * keep) * (1.0 - dm)


# --------------------------------------------------------------------------- #
# Wrapper
# --------------------------------------------------------------------------- #
def mask_conv2d(x, weight, bias, mask=None, dmask=None, *, stride=1, padding=1,
                skip_mask=False, rows_per_band=None, target_band_len=1024,
                vmem_limit_bytes=48 * 1024 * 1024):
    """MaskConv2d.forward(x, mask, dmask, skip_mask), NCHW, f32 in / f32 out.

    mask  : (B, H, W)   bool/{0,1}, True = masked input pixel  (x * ~mask path)
    dmask : (B, Ho, Wo) bool/{0,1}, True = take full-conv output at that pixel
    """
    B, Cin, H, W = x.shape
    Cout, Cin_w, kh, kw = weight.shape
    assert Cin == Cin_w, "channel mismatch between x and weight"
    sh_, sw_ = _as_pair(stride)
    ph, pw = _as_pair(padding)

    if sh_ != 1 or sw_ != 1:
        return _xla_mask_conv2d(x, weight, bias, mask, dmask, stride=stride,
                                padding=padding, skip_mask=skip_mask)

    Hp, Wp = H + 2 * ph, W + 2 * pw
    Ho, Wo = Hp - kh + 1, Wp - kw + 1
    assert Ho > 0 and Wo > 0, "empty convolution output"
    if not skip_mask:
        assert mask is not None and dmask is not None
        assert mask.shape == (B, H, W), f"mask must be (B,{H},{W}), got {mask.shape}"
        assert dmask.shape == (B, Ho, Wo), (
            f"dmask must match conv output spatial shape (B,{Ho},{Wo}), got {dmask.shape}")

    taps = kh * kw
    shifts = tuple(dy * Wp + dx for dy in range(kh) for dx in range(kw))

    # ---- band sizing (lane-dense, multiples of 128) ----
    if rows_per_band is None:
        th = max(1, min(Ho, target_band_len // Wp))
    else:
        th = max(1, min(Ho, int(rows_per_band)))
    n_bands = -(-Ho // th)
    L = th * Wp                                  # valid pseudo-output length / band
    Lp = _round_up(L, 128)                       # padded band output length
    Lx = _round_up(Lp + shifts[-1], 128)         # band input length incl. tap halo

    Cin_p = _round_up(Cin, 16)                   # bf16 sublane tile
    Cout_p = _round_up(Cout, 8)                  # f32 sublane tile
    # TODO(synk): for production sizes pad Cout (matmul M) to 128 (v5e) / 256
    # (v6e, v7x) multiples for full systolic-array utilization.

    # ---- bf16 banded inputs (flat-shift layout); only ~2 halo rows duplicated ----
    x_pad = jnp.pad(x.astype(jnp.bfloat16),
                    ((0, 0), (0, Cin_p - Cin), (ph, ph), (pw, pw)))
    x_flat = x_pad.reshape(B, Cin_p, Hp * Wp)
    flat_need = (n_bands - 1) * th * Wp + Lx
    if flat_need > Hp * Wp:
        x_flat = jnp.pad(x_flat, ((0, 0), (0, 0), (0, flat_need - Hp * Wp)))
    x_bands = jnp.stack(
        [x_flat[:, :, b * th * Wp: b * th * Wp + Lx] for b in range(n_bands)],
        axis=1)                                               # (B, n_bands, Cin_p, Lx)

    # ---- weights / bias (K = tap-major x Cin, matches pbuf row layout) ----
    w_t = jnp.transpose(weight, (0, 2, 3, 1)).reshape(Cout, taps, Cin)
    w_t = jnp.pad(w_t, ((0, Cout_p - Cout), (0, 0), (0, Cin_p - Cin)))
    w2 = w_t.reshape(Cout_p, taps * Cin_p).astype(jnp.bfloat16)
    b2 = jnp.pad(bias.astype(jnp.float32), (0, Cout_p - Cout)).reshape(Cout_p, 1)

    # ---- grid: larger parallel axis first so both TensorCores get work ----
    bands_major = n_bands >= B
    grid = (n_bands, B) if bands_major else (B, n_bands)
    if bands_major:
        band_map = lambda j, b: (b, j, 0, 0)
    else:
        band_map = lambda b, j: (b, j, 0, 0)
    const_map = lambda *_: (0, 0)

    out_shape = jax.ShapeDtypeStruct((B, n_bands, Cout_p, Lp), jnp.float32)
    scratch = [pltpu.VMEM((taps * Cin_p, Lp), jnp.bfloat16)]
    cparams = pltpu.CompilerParams(
        dimension_semantics=("parallel", "parallel"),
        vmem_limit_bytes=vmem_limit_bytes)

    if skip_mask:
        out = pl.pallas_call(
            functools.partial(_conv_band_kernel, shifts=shifts, cin=Cin_p, lp=Lp),
            out_shape=out_shape,
            grid_spec=pltpu.PrefetchScalarGridSpec(
                num_scalar_prefetch=0, grid=grid,
                in_specs=[
                    pl.BlockSpec((1, 1, Cin_p, Lx), band_map),
                    pl.BlockSpec((Cout_p, taps * Cin_p), const_map),
                    pl.BlockSpec((Cout_p, 1), const_map),
                ],
                out_specs=pl.BlockSpec((1, 1, Cout_p, Lp), band_map),
                scratch_shapes=scratch),
            compiler_params=cparams,
        )(x_bands, w2, b2)
    else:
        keep = (1.0 - mask.astype(jnp.float32)).astype(jnp.bfloat16)    # (B, H, W)
        keep_pad = jnp.pad(keep, ((0, 0), (ph, ph), (pw, pw)))
        keep_flat = keep_pad.reshape(B, 1, Hp * Wp)
        if flat_need > Hp * Wp:
            keep_flat = jnp.pad(keep_flat, ((0, 0), (0, 0), (0, flat_need - Hp * Wp)))
        keep_bands = jnp.stack(
            [keep_flat[:, :, b * th * Wp: b * th * Wp + Lx] for b in range(n_bands)],
            axis=1)                                           # (B, n_bands, 1, Lx)

        dm = jnp.pad(dmask.astype(jnp.bfloat16), ((0, 0), (0, 0), (0, Wp - Wo)))
        dm_flat = dm.reshape(B, 1, Ho * Wp)
        dm_need = (n_bands - 1) * th * Wp + Lp
        if dm_need > Ho * Wp:
            dm_flat = jnp.pad(dm_flat, ((0, 0), (0, 0), (0, dm_need - Ho * Wp)))
        dm_bands = jnp.stack(
            [dm_flat[:, :, b * th * Wp: b * th * Wp + Lp] for b in range(n_bands)],
            axis=1)                                           # (B, n_bands, 1, Lp)

        out = pl.pallas_call(
            functools.partial(_mask_conv_band_kernel, shifts=shifts, cin=Cin_p, lp=Lp),
            out_shape=out_shape,
            grid_spec=pltpu.PrefetchScalarGridSpec(
                num_scalar_prefetch=0, grid=grid,
                in_specs=[
                    pl.BlockSpec((1, 1, Cin_p, Lx), band_map),
                    pl.BlockSpec((1, 1, 1, Lx), band_map),
                    pl.BlockSpec((1, 1, 1, Lp), band_map),
                    pl.BlockSpec((Cout_p, taps * Cin_p), const_map),
                    pl.BlockSpec((Cout_p, 1), const_map),
                ],
                out_specs=pl.BlockSpec((1, 1, Cout_p, Lp), band_map),
                scratch_shapes=scratch),
            compiler_params=cparams,
        )(x_bands, keep_bands, dm_bands, w2, b2)

    # (B, n_bands, Cout_p, Lp) pseudo grid  ->  (B, Cout, Ho, Wo)
    out = out[:, :, :Cout, :L].reshape(B, n_bands, Cout, th, Wp)[..., :Wo]
    out = jnp.transpose(out, (0, 2, 1, 3, 4)).reshape(B, Cout, n_bands * th, Wo)
    return out[:, :, :Ho, :]


# --------------------------------------------------------------------------- #
# Pure-JAX f32 reference (mirrors the PyTorch module) for validation
# --------------------------------------------------------------------------- #
def ref_mask_conv2d(x, weight, bias, mask, dmask, *, stride=1, padding=1,
                    skip_mask=False):
    return _xla_mask_conv2d(x, weight, bias, mask, dmask, stride=stride,
                            padding=padding, skip_mask=skip_mask)


# --------------------------------------------------------------------------- #
if __name__ == "__main__":
    B, Cin, Cout, H, W = 2, 8, 16, 16, 16
    key = jax.random.PRNGKey(0)
    kx, kw_, kb, km, kd = jax.random.split(key, 5)

    x = jax.random.normal(kx, (B, Cin, H, W), jnp.float32)
    weight = (0.1 * jax.random.normal(kw_, (Cout, Cin, 3, 3))).astype(jnp.float32)
    bias = (0.1 * jax.random.normal(kb, (Cout,))).astype(jnp.float32)
    mask = jax.random.bernoulli(km, 0.3, (B, H, W))     # True = masked input pixel
    dmask = jax.random.bernoulli(kd, 0.5, (B, H, W))    # True = use full-conv output

    # masked path
    run = jax.jit(lambda a, w, b, m, d: mask_conv2d(a, w, b, m, d,
                                                    stride=1, padding=1))
    out = jax.block_until_ready(run(x, weight, bias, mask, dmask))
    ref = ref_mask_conv2d(x, weight, bias, mask, dmask)
    assert out.shape == (B, Cout, H, W)
    assert not bool(jnp.any(jnp.isnan(out)))
    err = float(jnp.max(jnp.abs(out - ref)))
    # bf16 MXU operands with f32 accumulation -> tolerance above f32 exactness.
    assert err < 5e-2, f"masked path mismatch vs reference: max_diff={err}"

    # skip_mask path (plain convolution, specialized kernel)
    run_skip = jax.jit(lambda a, w, b: mask_conv2d(a, w, b, skip_mask=True,
                                                   stride=1, padding=1))
    out_s = jax.block_until_ready(run_skip(x, weight, bias))
    ref_s = ref_mask_conv2d(x, weight, bias, mask, dmask, skip_mask=True)
    err_s = float(jnp.max(jnp.abs(out_s - ref_s)))
    assert err_s < 5e-2, f"skip_mask path mismatch vs reference: max_diff={err_s}"

    print("KERNEL_OK")
</pallas_src>

<mosaic_0001>
module attributes {stable_mosaic.version = 11 : i64} {
  func.func @_mask_conv_band_kernel(%arg0: i32, %arg1: i32, %arg2: memref<1x1x16x512xbf16, #tpu.memory_space<vmem>>, %arg3: memref<1x1x1x512xbf16, #tpu.memory_space<vmem>>, %arg4: memref<1x1x1x384xbf16, #tpu.memory_space<vmem>>, %arg5: memref<16x144xbf16, #tpu.memory_space<vmem>>, %arg6: memref<16x1xf32, #tpu.memory_space<vmem>>, %arg7: memref<1x1x16x384xf32, #tpu.memory_space<vmem>>, %arg8: memref<144x384xbf16, #tpu.memory_space<vmem>>) attributes {dimension_semantics = [#tpu.dimension_semantics<parallel>, #tpu.dimension_semantics<parallel>], iteration_bounds = array<i64: 2, 1>, scalar_prefetch = 0 : i64, scratch_operands = 1 : i64, tpu.core_type = #tpu.core_type<tc>, window_params = [{transform_indices = @transform_0, window_bounds = array<i64: 1, 1, 16, 512>}, {transform_indices = @transform_1, window_bounds = array<i64: 1, 1, 1, 512>}, {transform_indices = @transform_2, window_bounds = array<i64: 1, 1, 1, 384>}, {pipeline_mode = #tpu.pipeline_mode<synchronous>, transform_indices = @transform_3, window_bounds = array<i64: 16, 144>}, {pipeline_mode = #tpu.pipeline_mode<synchronous>, transform_indices = @transform_4, window_bounds = array<i64: 16, 1>}, {transform_indices = @transform_5, window_bounds = array<i64: 1, 1, 16, 384>}]} {
    %c0 = arith.constant 0 : index
    %c0_0 = arith.constant 0 : index
    %c0_1 = arith.constant 0 : index
    %c0_2 = arith.constant 0 : index
    %0 = vector.load %arg2[%c0, %c0_0, %c0_1, %c0_2] : memref<1x1x16x512xbf16, #tpu.memory_space<vmem>>, vector<1x1x16x512xbf16>
    %1 = vector.shape_cast %0 : vector<1x1x16x512xbf16> to vector<16x512xbf16>
    %c0_3 = arith.constant 0 : index
    %c0_4 = arith.constant 0 : index
    %c0_5 = arith.constant 0 : index
    %c0_6 = arith.constant 0 : index
    %2 = vector.load %arg3[%c0_3, %c0_4, %c0_5, %c0_6] : memref<1x1x1x512xbf16, #tpu.memory_space<vmem>>, vector<1x1x1x512xbf16>
    %3 = vector.shape_cast %2 : vector<1x1x1x512xbf16> to vector<1x512xbf16>
    %c0_7 = arith.constant 0 : index
    %c0_8 = arith.constant 0 : index
    %c0_9 = arith.constant 0 : index
    %c0_10 = arith.constant 0 : index
    %4 = vector.load %arg4[%c0_7, %c0_8, %c0_9, %c0_10] : memref<1x1x1x384xbf16, #tpu.memory_space<vmem>>, vector<1x1x1x384xbf16>
    %5 = vector.shape_cast %4 : vector<1x1x1x384xbf16> to vector<1x384xbf16>
    %6 = vector.extract_strided_slice %3 {offsets = [0, 0], sizes = [1, 384], strides = [1, 1]} : vector<1x512xbf16> to vector<1x384xbf16>
    %7 = arith.maximumf %5, %6 : vector<1x384xbf16>
    %8 = vector.extract_strided_slice %1 {offsets = [0, 0], sizes = [16, 384], strides = [1, 1]} : vector<16x512xbf16> to vector<16x384xbf16>
    %9 = vector.broadcast %7 : vector<1x384xbf16> to vector<16x384xbf16>
    %10 = arith.mulf %8, %9 : vector<16x384xbf16>
    %c0_11 = arith.constant 0 : index
    %c0_12 = arith.constant 0 : index
    %11 = vector.load %arg8[%c0_11, %c0_12] : memref<144x384xbf16, #tpu.memory_space<vmem>>, vector<16x384xbf16>
    tpu.vector_store %arg8[%c0_11, %c0_12], %10 {strides = array<i32>} : memref<144x384xbf16, #tpu.memory_space<vmem>>, vector<16x384xbf16>,
    %12 = vector.extract_strided_slice %3 {offsets = [0, 1], sizes = [1, 384], strides = [1, 1]} : vector<1x512xbf16> to vector<1x384xbf16>
    %13 = arith.maximumf %5, %12 : vector<1x384xbf16>
    %14 = vector.extract_strided_slice %1 {offsets = [0, 1], sizes = [16, 384], strides = [1, 1]} : vector<16x512xbf16> to vector<16x384xbf16>
    %15 = vector.broadcast %13 : vector<1x384xbf16> to vector<16x384xbf16>
    %16 = arith.mulf %14, %15 : vector<16x384xbf16>
    %c16 = arith.constant 16 : index
    %c0_13 = arith.constant 0 : index
    %17 = vector.load %arg8[%c16, %c0_13] : memref<144x384xbf16, #tpu.memory_space<vmem>>, vector<16x384xbf16>
    tpu.vector_store %arg8[%c16, %c0_13], %16 {strides = array<i32>} : memref<144x384xbf16, #tpu.memory_space<vmem>>, vector<16x384xbf16>,
    %18 = vector.extract_strided_slice %3 {offsets = [0, 2], sizes = [1, 384], strides = [1, 1]} : vector<1x512xbf16> to vector<1x384xbf16>
    %19 = arith.maximumf %5, %18 : vector<1x384xbf16>
    %20 = vector.extract_strided_slice %1 {offsets = [0, 2], sizes = [16, 384], strides = [1, 1]} : vector<16x512xbf16> to vector<16x384xbf16>
    %21 = vector.broadcast %19 : vector<1x384xbf16> to vector<16x384xbf16>
    %22 = arith.mulf %20, %21 : vector<16x384xbf16>
    %c32 = arith.constant 32 : index
    %c0_14 = arith.constant 0 : index
    %23 = vector.load %arg8[%c32, %c0_14] : memref<144x384xbf16, #tpu.memory_space<vmem>>, vector<16x384xbf16>
    tpu.vector_store %arg8[%c32, %c0_14], %22 {strides = array<i32>} : memref<144x384xbf16, #tpu.memory_space<vmem>>, vector<16x384xbf16>,
    %24 = vector.extract_strided_slice %3 {offsets = [0, 18], sizes = [1, 384], strides = [1, 1]} : vector<1x512xbf16> to vector<1x384xbf16>
    %25 = arith.maximumf %5, %24 : vector<1x384xbf16>
    %26 = vector.extract_strided_slice %1 {offsets = [0, 18], sizes = [16, 384], strides = [1, 1]} : vector<16x512xbf16> to vector<16x384xbf16>
    %27 = vector.broadcast %25 : vector<1x384xbf16> to vector<16x384xbf16>
    %28 = arith.mulf %26, %27 : vector<16x384xbf16>
    %c48 = arith.constant 48 : index
    %c0_15 = arith.constant 0 : index
    %29 = vector.load %arg8[%c48, %c0_15] : memref<144x384xbf16, #tpu.memory_space<vmem>>, vector<16x384xbf16>
    tpu.vector_store %arg8[%c48, %c0_15], %28 {strides = array<i32>} : memref<144x384xbf16, #tpu.memory_space<vmem>>, vector<16x384xbf16>,
    %30 = vector.extract_strided_slice %3 {offsets = [0, 19], sizes = [1, 384], strides = [1, 1]} : vector<1x512xbf16> to vector<1x384xbf16>
    %31 = arith.maximumf %5, %30 : vector<1x384xbf16>
    %32 = vector.extract_strided_slice %1 {offsets = [0, 19], sizes = [16, 384], strides = [1, 1]} : vector<16x512xbf16> to vector<16x384xbf16>
    %33 = vector.broadcast %31 : vector<1x384xbf16> to vector<16x384xbf16>
    %34 = arith.mulf %32, %33 : vector<16x384xbf16>
    %c64 = arith.constant 64 : index
    %c0_16 = arith.constant 0 : index
    %35 = vector.load %arg8[%c64, %c0_16] : memref<144x384xbf16, #tpu.memory_space<vmem>>, vector<16x384xbf16>
    tpu.vector_store %arg8[%c64, %c0_16], %34 {strides = array<i32>} : memref<144x384xbf16, #tpu.memory_space<vmem>>, vector<16x384xbf16>,
    %36 = vector.extract_strided_slice %3 {offsets = [0, 20], sizes = [1, 384], strides = [1, 1]} : vector<1x512xbf16> to vector<1x384xbf16>
    %37 = arith.maximumf %5, %36 : vector<1x384xbf16>
    %38 = vector.extract_strided_slice %1 {offsets = [0, 20], sizes = [16, 384], strides = [1, 1]} : vector<16x512xbf16> to vector<16x384xbf16>
    %39 = vector.broadcast %37 : vector<1x384xbf16> to vector<16x384xbf16>
    %40 = arith.mulf %38, %39 : vector<16x384xbf16>
    %c80 = arith.constant 80 : index
    %c0_17 = arith.constant 0 : index
    %41 = vector.load %arg8[%c80, %c0_17] : memref<144x384xbf16, #tpu.memory_space<vmem>>, vector<16x384xbf16>
    tpu.vector_store %arg8[%c80, %c0_17], %40 {strides = array<i32>} : memref<144x384xbf16, #tpu.memory_space<vmem>>, vector<16x384xbf16>,
    %42 = vector.extract_strided_slice %3 {offsets = [0, 36], sizes = [1, 384], strides = [1, 1]} : vector<1x512xbf16> to vector<1x384xbf16>
    %43 = arith.maximumf %5, %42 : vector<1x384xbf16>
    %44 = vector.extract_strided_slice %1 {offsets = [0, 36], sizes = [16, 384], strides = [1, 1]} : vector<16x512xbf16> to vector<16x384xbf16>
    %45 = vector.broadcast %43 : vector<1x384xbf16> to vector<16x384xbf16>
    %46 = arith.mulf %44, %45 : vector<16x384xbf16>
    %c96 = arith.constant 96 : index
    %c0_18 = arith.constant 0 : index
    %47 = vector.load %arg8[%c96, %c0_18] : memref<144x384xbf16, #tpu.memory_space<vmem>>, vector<16x384xbf16>
    tpu.vector_store %arg8[%c96, %c0_18], %46 {strides = array<i32>} : memref<144x384xbf16, #tpu.memory_space<vmem>>, vector<16x384xbf16>,
    %48 = vector.extract_strided_slice %3 {offsets = [0, 37], sizes = [1, 384], strides = [1, 1]} : vector<1x512xbf16> to vector<1x384xbf16>
    %49 = arith.maximumf %5, %48 : vector<1x384xbf16>
    %50 = vector.extract_strided_slice %1 {offsets = [0, 37], sizes = [16, 384], strides = [1, 1]} : vector<16x512xbf16> to vector<16x384xbf16>
    %51 = vector.broadcast %49 : vector<1x384xbf16> to vector<16x384xbf16>
    %52 = arith.mulf %50, %51 : vector<16x384xbf16>
    %c112 = arith.constant 112 : index
    %c0_19 = arith.constant 0 : index
    %53 = vector.load %arg8[%c112, %c0_19] : memref<144x384xbf16, #tpu.memory_space<vmem>>, vector<16x384xbf16>
    tpu.vector_store %arg8[%c112, %c0_19], %52 {strides = array<i32>} : memref<144x384xbf16, #tpu.memory_space<vmem>>, vector<16x384xbf16>,
    %54 = vector.extract_strided_slice %3 {offsets = [0, 38], sizes = [1, 384], strides = [1, 1]} : vector<1x512xbf16> to vector<1x384xbf16>
    %55 = arith.maximumf %5, %54 : vector<1x384xbf16>
    %56 = vector.extract_strided_slice %1 {offsets = [0, 38], sizes = [16, 384], strides = [1, 1]} : vector<16x512xbf16> to vector<16x384xbf16>
    %57 = vector.broadcast %55 : vector<1x384xbf16> to vector<16x384xbf16>
    %58 = arith.mulf %56, %57 : vector<16x384xbf16>
    %c128 = arith.constant 128 : index
    %c0_20 = arith.constant 0 : index
    %59 = vector.load %arg8[%c128, %c0_20] : memref<144x384xbf16, #tpu.memory_space<vmem>>, vector<16x384xbf16>
    tpu.vector_store %arg8[%c128, %c0_20], %58 {strides = array<i32>} : memref<144x384xbf16, #tpu.memory_space<vmem>>, vector<16x384xbf16>,
    %c0_21 = arith.constant 0 : index
    %c0_22 = arith.constant 0 : index
    %60 = vector.load %arg5[%c0_21, %c0_22] : memref<16x144xbf16, #tpu.memory_space<vmem>>, vector<16x144xbf16>
    %c0_23 = arith.constant 0 : index
    %c0_24 = arith.constant 0 : index
    %61 = vector.load %arg8[%c0_23, %c0_24] : memref<144x384xbf16, #tpu.memory_space<vmem>>, vector<144x384xbf16>
    %cst = arith.constant dense<0.000000e+00> : vector<16x384xf32>
    %62 = tpu.matmul %60, %61, %cst {dimension_numbers = #tpu.dot_dimension_numbers<[1], [0], [0], [1], [0, 0, 1, 1], [], []>} : vector<16x144xbf16>, vector<144x384xbf16>, vector<16x384xf32> -> vector<16x384xf32>
    %c0_25 = arith.constant 0 : index
    %c0_26 = arith.constant 0 : index
    %63 = vector.load %arg6[%c0_25, %c0_26] : memref<16x1xf32, #tpu.memory_space<vmem>>, vector<16x1xf32>
    %64 = vector.broadcast %63 : vector<16x1xf32> to vector<16x384xf32>
    %65 = arith.addf %62, %64 : vector<16x384xf32>
    %c0_27 = arith.constant 0 : index
    %c0_28 = arith.constant 0 : index
    %c0_29 = arith.constant 0 : index
    %c0_30 = arith.constant 0 : index
    %66 = vector.load %arg7[%c0_27, %c0_28, %c0_29, %c0_30] : memref<1x1x16x384xf32, #tpu.memory_space<vmem>>, vector<1x1x16x384xf32>
    %67 = vector.shape_cast %66 : vector<1x1x16x384xf32> to vector<16x384xf32>
    %68 = vector.shape_cast %65 : vector<16x384xf32> to vector<1x1x16x384xf32>
    tpu.vector_store %arg7[%c0_27, %c0_28, %c0_29, %c0_30], %68 {strides = array<i32>} : memref<1x1x16x384xf32, #tpu.memory_space<vmem>>, vector<1x1x16x384xf32>,
    return
  }
  func.func @transform_0(%arg0: i32, %arg1: i32) -> (i32, i32, i32, i32) {
    %c0_i32 = arith.constant 0 : i32
    %c0_i32_0 = arith.constant 0 : i32
    %c0_i32_1 = arith.constant 0 : i32
    return %arg0, %arg1, %c0_i32, %c0_i32_0 : i32, i32, i32, i32
  }
  func.func @transform_1(%arg0: i32, %arg1: i32) -> (i32, i32, i32, i32) {
    %c0_i32 = arith.constant 0 : i32
    %c0_i32_0 = arith.constant 0 : i32
    %c0_i32_1 = arith.constant 0 : i32
    return %arg0, %arg1, %c0_i32, %c0_i32_0 : i32, i32, i32, i32
  }
  func.func @transform_2(%arg0: i32, %arg1: i32) -> (i32, i32, i32, i32) {
    %c0_i32 = arith.constant 0 : i32
    %c0_i32_0 = arith.constant 0 : i32
    %c0_i32_1 = arith.constant 0 : i32
    return %arg0, %arg1, %c0_i32, %c0_i32_0 : i32, i32, i32, i32
  }
  func.func @transform_3(%arg0: i32, %arg1: i32) -> (i32, i32) {
    %c0_i32 = arith.constant 0 : i32
    %c0_i32_0 = arith.constant 0 : i32
    %c0_i32_1 = arith.constant 0 : i32
    return %c0_i32, %c0_i32_0 : i32, i32
  }
  func.func @transform_4(%arg0: i32, %arg1: i32) -> (i32, i32) {
    %c0_i32 = arith.constant 0 : i32
    %c0_i32_0 = arith.constant 0 : i32
    %c0_i32_1 = arith.constant 0 : i32
    return %c0_i32, %c0_i32_0 : i32, i32
  }
  func.func @transform_5(%arg0: i32, %arg1: i32) -> (i32, i32, i32, i32) {
    %c0_i32 = arith.constant 0 : i32
    %c0_i32_0 = arith.constant 0 : i32
    %c0_i32_1 = arith.constant 0 : i32
    return %arg0, %arg1, %c0_i32, %c0_i32_0 : i32, i32, i32, i32
  }
}

</mosaic_0001>

<llo_original>
// kernel: _lambda_.1
$region0: #{_lambda_.1}
  #allocation0 [shape = 'u32[]', space=smem, size = 0x4, offset = 0x4, fixed_abs, tag = 'smem constant byte address 0x4 - core index']
  #allocation1 [shape = 'u32[72,128]{1,0:T(1,128)}', space=vmem, size = 0x9000, scoped, tag = 'internal scratch']
  #allocation2 [shape = 'bf16[144,384]{1,0:T(8,128)(2,1)}', space=vmem, size = 0x1b000, scoped, tag = 'scratch operand']
  %s0 = inlined_call_operand.vmem [shape: bf16[2,1,16,512], index: 0, kind: input, shape index: {}]
  %s1 = inlined_call_operand.vmem [shape: bf16[2,1,1,512], index: 1, kind: input, shape index: {}]
  %s2 = inlined_call_operand.vmem [shape: bf16[2,1,1,384], index: 2, kind: input, shape index: {}]
  %s3 = inlined_call_operand.vmem [shape: bf16[16,144], index: 3, kind: input, shape index: {}]
  %s4 = inlined_call_operand.vmem [shape: f32[16,1], index: 4, kind: input, shape index: {}]
  %s5 = inlined_call_operand.vmem [shape: f32[2,1,16,384], index: 5, kind: output, shape index: {}]
  %s6 = sld [smem:[#allocation0]]
  $region53: #{_lambda_.1} parent=0
    _
  %s8 = ssub.s32 1, %s6
  %s9 = scalar_select 0, %s8, %s6
  loop: start=0, step=1, limit=4
  $region2: #{_lambda_.1} parent=0 // loop_pre_header
    _
  $region3: #{_lambda_.1} parent=0 // loop_header
    %s11 = sphi 0, %s15
    %p12 = scmp.ge.s32.totalorder %s11, 4
    %s18 = sphi 0, %s30
    %s19 = sphi 0, %s26
    %s20 = sphi 0, %s18
    %s21 = sphi 0, %s19
    %s22 = sphi 0, %s20
    %s23 = sphi 0, %s21
    %s35 = sphi 0, %s37
    %s38 = sphi 0, %s35
    %s39 = sphi 0, %s38
    %s55 = sphi 0, %s39
    %s63 = sphi 0, %s65
    %s66 = sphi 0, %s63
    %s67 = sphi 0, %s66
    %s83 = sphi 0, %s67
    %s91 = sphi 0, %s93
    %s94 = sphi 0, %s91
    %s95 = sphi 0, %s94
    %s111 = sphi 0, %s95
    %s115 = sphi 0, %s115
    %s117 = sphi 0, %s115
    %s118 = sphi 0, %s117
    %s132 = sphi 0, %s118
    %s136 = sphi 0, %s136
    %s138 = sphi 0, %s136
    %s139 = sphi 0, %s138
    %s153 = sphi 0, %s139
    %s161 = sphi 0, %s163
    %s164 = sphi 0, %s161
    %s165 = sphi 0, %s164
    %s181 = sphi 0, %s165
  $region4: #{_lambda_.1} parent=0 // loop_header_branch
    %14 = sbr.rel (%p12) target = $region8
  $region5: #{_lambda_.1} parent=0 // loop_body
    %s16 = ssub.s32 %s11, 1
    %s17 = ssub.s32 %s11, 2
    %s24 = sadd.s32 1, %s19
    %p25 = scmp.ge.s32.totalorder %s24, 1
    %s26 = scalar_select %p25, 0, %s24
    %s27 = sadd.s32 1, %s18
    %s28 = scalar_select %p25, %s27, %s18
    %p29 = scmp.ge.s32.totalorder %s28, 2
    %s30 = scalar_select %p29, 0, %s28
    %s31 = ssub.s32 %s18, %s30
    %s32 = ssub.s32 %s19, %s26
    %s33 = sor.u32 %s31, %s32
    %p34 = scmp.eq.s32.totalorder %s33, 0
    %s36 = sadd.s32 %s35, 1
    %s37 = scalar_select %p34, %s35, %s36
    %p40 = pneg %p34
    %p41 = scmp.eq.s32.totalorder %s11, 1
    %p42 = por %p40, %p41
    %p43 = scmp.ne.s32.totalorder %s35, %s38
    %p44 = scmp.eq.s32.totalorder %s11, 0
    %p45 = por %p43, %p44
    %p46 = scmp.ne.s32.totalorder %s35, %s38
    %p47 = scmp.eq.s32.totalorder %s16, 1
    %p48 = por %p46, %p47
    %p49 = scmp.ne.s32.totalorder %s38, %s39
    %p50 = scmp.eq.s32.totalorder %s16, 0
    %p51 = por %p49, %p50
    %p52 = scmp.ne.s32.totalorder %s38, %s39
    %p53 = scmp.eq.s32.totalorder %s17, 1
    %p54 = por %p52, %p53
    %p56 = scmp.ne.s32.totalorder %s39, %s55
    %p57 = scmp.eq.s32.totalorder %s17, 0
    %p58 = por %p56, %p57
    %s59 = ssub.s32 %s18, %s30
    %s60 = ssub.s32 %s19, %s26
    %s61 = sor.u32 %s59, %s60
    %p62 = scmp.eq.s32.totalorder %s61, 0
    %s64 = sadd.s32 %s63, 1
    %s65 = scalar_select %p62, %s63, %s64
    %p68 = pneg %p62
    %p69 = scmp.eq.s32.totalorder %s11, 1
    %p70 = por %p68, %p69
    %p71 = scmp.ne.s32.totalorder %s63, %s66
    %p72 = scmp.eq.s32.totalorder %s11, 0
    %p73 = por %p71, %p72
    %p74 = scmp.ne.s32.totalorder %s63, %s66
    %p75 = scmp.eq.s32.totalorder %s16, 1
    %p76 = por %p74, %p75
    %p77 = scmp.ne.s32.totalorder %s66, %s67
    %p78 = scmp.eq.s32.totalorder %s16, 0
    %p79 = por %p77, %p78
    %p80 = scmp.ne.s32.totalorder %s66, %s67
    %p81 = scmp.eq.s32.totalorder %s17, 1
    %p82 = por %p80, %p81
    %p84 = scmp.ne.s32.totalorder %s67, %s83
    %p85 = scmp.eq.s32.totalorder %s17, 0
    %p86 = por %p84, %p85
    %s87 = ssub.s32 %s18, %s30
    %s88 = ssub.s32 %s19, %s26
    %s89 = sor.u32 %s87, %s88
    %p90 = scmp.eq.s32.totalorder %s89, 0
    %s92 = sadd.s32 %s91, 1
    %s93 = scalar_select %p90, %s91, %s92
    %p96 = pneg %p90
    %p97 = scmp.eq.s32.totalorder %s11, 1
    %p98 = por %p96, %p97
    %p99 = scmp.ne.s32.totalorder %s91, %s94
    %p100 = scmp.eq.s32.totalorder %s11, 0
    %p101 = por %p99, %p100
    %p102 = scmp.ne.s32.totalorder %s91, %s94
    %p103 = scmp.eq.s32.totalorder %s16, 1
    %p104 = por %p102, %p103
    %p105 = scmp.ne.s32.totalorder %s94, %s95
    %p106 = scmp.eq.s32.totalorder %s16, 0
    %p107 = por %p105, %p106
    %p108 = scmp.ne.s32.totalorder %s94, %s95
    %p109 = scmp.eq.s32.totalorder %s17, 1
    %p110 = por %p108, %p109
    %p112 = scmp.ne.s32.totalorder %s95, %s111
    %p113 = scmp.eq.s32.totalorder %s17, 0
    %p114 = por %p112, %p113
    %s116 = sadd.s32 %s115, 1
    %p119 = scmp.eq.s32.totalorder %s11, 1
    %p120 = scmp.ne.s32.totalorder %s115, %s117
    %p121 = scmp.eq.s32.totalorder %s11, 0
    %p122 = por %p120, %p121
    %p123 = scmp.ne.s32.totalorder %s115, %s117
    %p124 = scmp.eq.s32.totalorder %s16, 1
    %p125 = por %p123, %p124
    %p126 = scmp.ne.s32.totalorder %s117, %s118
    %p127 = scmp.eq.s32.totalorder %s16, 0
    %p128 = por %p126, %p127
    %p129 = scmp.ne.s32.totalorder %s117, %s118
    %p130 = scmp.eq.s32.totalorder %s17, 1
    %p131 = por %p129, %p130
    %p133 = scmp.ne.s32.totalorder %s118, %s132
    %p134 = scmp.eq.s32.totalorder %s17, 0
    %p135 = por %p133, %p134
    %s137 = sadd.s32 %s136, 1
    %p140 = scmp.eq.s32.totalorder %s11, 1
    %p141 = scmp.ne.s32.totalorder %s136, %s138
    %p142 = scmp.eq.s32.totalorder %s11, 0
    %p143 = por %p141, %p142
    %p144 = scmp.ne.s32.totalorder %s136, %s138
    %p145 = scmp.eq.s32.totalorder %s16, 1
    %p146 = por %p144, %p145
    %p147 = scmp.ne.s32.totalorder %s138, %s139
    %p148 = scmp.eq.s32.totalorder %s16, 0
    %p149 = por %p147, %p148
    %p150 = scmp.ne.s32.totalorder %s138, %s139
    %p151 = scmp.eq.s32.totalorder %s17, 1
    %p152 = por %p150, %p151
    %p154 = scmp.ne.s32.totalorder %s139, %s153
    %p155 = scmp.eq.s32.totalorder %s17, 0
    %p156 = por %p154, %p155
    %s157 = ssub.s32 %s18, %s30
    %s158 = ssub.s32 %s19, %s26
    %s159 = sor.u32 %s157, %s158
    %p160 = scmp.eq.s32.totalorder %s159, 0
    %s162 = sadd.s32 %s161, 1
    %s163 = scalar_select %p160, %s161, %s162
    %p166 = pneg %p160
    %p167 = scmp.eq.s32.totalorder %s11, 1
    %p168 = por %p166, %p167
    %p169 = scmp.ne.s32.totalorder %s161, %s164
    %p170 = scmp.eq.s32.totalorder %s11, 0
    %p171 = por %p169, %p170
    %p172 = scmp.ne.s32.totalorder %s161, %s164
    %p173 = scmp.eq.s32.totalorder %s16, 1
    %p174 = por %p172, %p173
    %p175 = scmp.ne.s32.totalorder %s164, %s165
    %p176 = scmp.eq.s32.totalorder %s16, 0
    %p177 = por %p175, %p176
    %p178 = scmp.ne.s32.totalorder %s164, %s165
    %p179 = scmp.eq.s32.totalorder %s17, 1
    %p180 = por %p178, %p179
    %p182 = scmp.ne.s32.totalorder %s165, %s181
    %p183 = scmp.eq.s32.totalorder %s17, 0
    %p184 = por %p182, %p183
    %p185 = scmp.le.s32.totalorder 1, %s11
    %p186 = scmp.lt.s32.totalorder %s11, 3
    %p187 = pnand %p185, %p186
    %p188 = pneg %p187
    // Predicated region
    $region9: #{_lambda_.1} parent=5 // pred_check
      _
    $region10: #{_lambda_.1} parent=5 // pred_check_branch
      %190 = sbr.rel (%p187) target = $region12
    $region11: #{_lambda_.1} parent=5 // pred_region
      %s191 = ssub.s32 %s11, 1
      // Predicated region
      $region13: #{_lambda_.1} parent=11 // pred_check
        %p192 = pneg %p128
      $region14: #{_lambda_.1} parent=11 // pred_check_branch
        %194 = sbr.rel (%p192) target = $region16
      $region15: #{_lambda_.1} parent=11 // pred_region
        _
      $region16: #{_lambda_.1} parent=11 // pred_fallthru
        _
      // Predicated region
      $region17: #{_lambda_.1} parent=11 // pred_check
        %p195 = pneg %p149
      $region18: #{_lambda_.1} parent=11 // pred_check_branch
        %197 = sbr.rel (%p195) target = $region20
      $region19: #{_lambda_.1} parent=11 // pred_region
        _
      $region20: #{_lambda_.1} parent=11 // pred_fallthru
        _
    $region12: #{_lambda_.1} parent=5 // pred_fallthru
      _
    %p198 = scmp.lt.s32.totalorder %s11, 2
    // Predicated region
    $region21: #{_lambda_.1} parent=5 // pred_check
      %p199 = pneg %p198
    $region22: #{_lambda_.1} parent=5 // pred_check_branch
      %201 = sbr.rel (%p199) target = $region24
    $region23: #{_lambda_.1} parent=5 // pred_region
      // Predicated region
      $region25: #{_lambda_.1} parent=23 // pred_check
        %p202 = pneg %p45
      $region26: #{_lambda_.1} parent=23 // pred_check_branch
        %204 = sbr.rel (%p202) target = $region28
      $region27: #{_lambda_.1} parent=23 // pred_region
        %p205 = scmp.lt.s32.totalorder %s18, 1
        %s206 = scalar_select %p205, %s18, 1
        %p207 = scmp.lt.s32.totalorder %s19, 0
        %s208 = scalar_select %p207, %s19, 0
        %s209 = smul.addr %s208, 8
        %s210 = smul.addr %s206, 8
        %s211 = sadd.s32 %s209, %s210
        %s212 = smul.addr %s211, 4
        %s213 = scalar_lea.vmem %s0, %s212
      $region28: #{_lambda_.1} parent=23 // pred_fallthru
        _
      // Predicated region
      $region29: #{_lambda_.1} parent=23 // pred_check
        %p214 = pneg %p73
      $region30: #{_lambda_.1} parent=23 // pred_check_branch
        %216 = sbr.rel (%p214) target = $region32
      $region31: #{_lambda_.1} parent=23 // pred_region
        %p217 = scmp.lt.s32.totalorder %s18, 1
        %s218 = scalar_select %p217, %s18, 1
        %p219 = scmp.lt.s32.totalorder %s19, 0
        %s220 = scalar_select %p219, %s19, 0
        %s221 = smul.addr %s220, 4
        %s222 = smul.addr %s218, 4
        %s223 = sadd.s32 %s221, %s222
        %s224 = scalar_lea.vmem %s1, %s223
      $region32: #{_lambda_.1} parent=23 // pred_fallthru
        _
      // Predicated region
      $region33: #{_lambda_.1} parent=23 // pred_check
        %p225 = pneg %p101
      $region34: #{_lambda_.1} parent=23 // pred_check_branch
        %227 = sbr.rel (%p225) target = $region36
      $region35: #{_lambda_.1} parent=23 // pred_region
        %p228 = scmp.lt.s32.totalorder %s18, 1
        %s229 = scalar_select %p228, %s18, 1
        %p230 = scmp.lt.s32.totalorder %s19, 0
        %s231 = scalar_select %p230, %s19, 0
        %s232 = smul.addr %s231, 3
        %s233 = smul.addr %s229, 3
        %s234 = sadd.s32 %s232, %s233
        %s235 = scalar_lea.vmem %s2, %s234
      $region36: #{_lambda_.1} parent=23 // pred_fallthru
        _
    $region24: #{_lambda_.1} parent=5 // pred_fallthru
      _
    %p236 = scmp.le.s32.totalorder 1, %s11
    %p237 = scmp.lt.s32.totalorder %s11, 3
    %p238 = pnand %p236, %p237
    %p239 = pneg %p238
    // Predicated region
    $region37: #{_lambda_.1} parent=5 // pred_check
      _
    $region38: #{_lambda_.1} parent=5 // pred_check_branch
      %241 = sbr.rel (%p238) target = $region40
    $region39: #{_lambda_.1} parent=5 // pred_region
      %s242 = ssub.s32 %s11, 1
      %p243 = scmp.lt.s32.totalorder %s20, 1
      %s244 = scalar_select %p243, %s20, 1
      %p245 = scmp.lt.s32.totalorder %s21, 0
      %s246 = scalar_select %p245, %s21, 0
      %s247 = smul.addr %s246, 8
      %s248 = smul.addr %s244, 8
      %s249 = sadd.s32 %s247, %s248
      %s250 = smul.addr %s249, 4
      %s251 = scalar_lea.vmem %s0, %s250
      %p252 = pneg %p51
      %p253 = pneg %p48
      %p254 = scmp.lt.s32.totalorder %s20, 1
      %s255 = scalar_select %p254, %s20, 1
      %p256 = scmp.lt.s32.totalorder %s21, 0
      %s257 = scalar_select %p256, %s21, 0
      %s258 = smul.addr %s257, 4
      %s259 = smul.addr %s255, 4
      %s260 = sadd.s32 %s258, %s259
      %s261 = scalar_lea.vmem %s1, %s260
      %p262 = pneg %p79
      %p263 = pneg %p76
      %p264 = scmp.lt.s32.totalorder %s20, 1
      %s265 = scalar_select %p264, %s20, 1
      %p266 = scmp.lt.s32.totalorder %s21, 0
      %s267 = scalar_select %p266, %s21, 0
      %s268 = smul.addr %s267, 3
      %s269 = smul.addr %s265, 3
      %s270 = sadd.s32 %s268, %s269
      %s271 = scalar_lea.vmem %s2, %s270
      %p272 = pneg %p107
      %p273 = pneg %p104
      %p274 = pneg %p128
      %p275 = pneg %p125
      %p276 = pneg %p149
      %p277 = pneg %p146
      %p278 = pneg %p177
      %p279 = pneg %p174
      %p280 = scmp.lt.s32.totalorder %s20, 1
      %s281 = scalar_select %p280, %s20, 1
      %p282 = scmp.lt.s32.totalorder %s21, 0
      %s283 = scalar_select %p282, %s21, 0
      %s284 = smul.addr %s283, 6
      %s285 = smul.addr %s281, 6
      %s286 = sadd.s32 %s284, %s285
      %s287 = smul.addr %s286, 8
      %s288 = scalar_lea.vmem %s5, %s287
      %p289 = scmp.lt.s32.totalorder %s20, 1
      %s290 = scalar_select %p289, %s20, 1
      %p291 = scmp.lt.s32.totalorder %s21, 0
      %s292 = scalar_select %p291, %s21, 0
      %s293 = smul.addr %s292, 8
      %s294 = smul.addr %s290, 8
      %s295 = sadd.s32 %s293, %s294
      %s296 = smul.addr %s295, 4
      %s297 = scalar_lea.vmem %s0, %s296
      %p298 = scmp.lt.s32.totalorder %s20, 1
      %s299 = scalar_select %p298, %s20, 1
      %p300 = scmp.lt.s32.totalorder %s21, 0
      %s301 = scalar_select %p300, %s21, 0
      %s302 = smul.addr %s301, 4
      %s303 = smul.addr %s299, 4
      %s304 = sadd.s32 %s302, %s303
      %s305 = scalar_lea.vmem %s1, %s304
      %p306 = scmp.lt.s32.totalorder %s20, 1
      %s307 = scalar_select %p306, %s20, 1
      %p308 = scmp.lt.s32.totalorder %s21, 0
      %s309 = scalar_select %p308, %s21, 0
      %s310 = smul.addr %s309, 3
      %s311 = smul.addr %s307, 3
      %s312 = sadd.s32 %s310, %s311
      %s313 = scalar_lea.vmem %s2, %s312
      %p314 = scmp.lt.s32.totalorder %s20, 1
      %s315 = scalar_select %p314, %s20, 1
      %p316 = scmp.lt.s32.totalorder %s21, 0
      %s317 = scalar_select %p316, %s21, 0
      %s318 = smul.addr %s317, 6
      %s319 = smul.addr %s315, 6
      %s320 = sadd.s32 %s318, %s319
      %s321 = smul.addr %s320, 8
      %s322 = scalar_lea.vmem %s5, %s321
      %v324 = vld [vmem:[%s297] sm:$0xff]
      %v325 = vld [vmem:[%s297 + $0x8] sm:$0xff]
      %v326 = vld [vmem:[%s297 + $0x10] sm:$0xff]
      %v327 = vld [vmem:[%s297 + $0x18] sm:$0xff]
      %v328 = vld [vmem:[%s305] sm:$0xf]
      %v329 = vld [vmem:[%s313] sm:$0x7]
      %v330 = vunpack.c.l.bf16 %v329
      %v331 = vunpack.c.l.bf16 %v328
      %v332 = vmax.f32 %v330, %v331
      %v334 = vperm.slane %v332, 0
      %v335 = vperm.slane %v332, 2
      %v336 = vperm.slane %v332, 4
      %v340 = vpack.c.bf16 %v335, %v334
      %v341 = vpack.c.bf16 %v336, %v336
      %v344 = vunpack.c.l.b16 %v340
      %v345 = vunpack.c.h.b16 %v340
      %v346 = vunpack.c.l.b16 %v341
      %v347 = vpack.c.b16 %v344, %v344
      %v348 = vpack.c.b16 %v345, %v345
      %v349 = vpack.c.b16 %v346, %v346
      %v351 = vpack.i.b16 %v347, %v347
      %v353 = vperm.slane %v351, 0
      %v355 = vpack.i.b16 %v348, %v348
      %v357 = vperm.slane %v355, 0
      %v359 = vpack.i.b16 %v349, %v349
      %v361 = vperm.slane %v359, 0
      %v362 = vunpack.c.l.bf16 %v324
      %v363 = vunpack.c.h.bf16 %v324
      %v364 = vunpack.c.l.bf16 %v325
      %v365 = vunpack.c.l.bf16 %v326
      %v366 = vunpack.c.h.bf16 %v326
      %v367 = vunpack.c.l.bf16 %v327
      %v368 = vunpack.c.l.bf16 %v353
      %v369 = vunpack.c.l.bf16 %v357
      %v370 = vunpack.c.l.bf16 %v361
      %v371 = vmul.f32 %v362, %v368
      %v372 = vmul.f32 %v363, %v369
      %v373 = vmul.f32 %v364, %v370
      %v374 = vmul.f32 %v365, %v368
      %v375 = vmul.f32 %v366, %v369
      %v376 = vmul.f32 %v367, %v370
      %v377 = vpack.c.bf16 %v372, %v371
      %v378 = vpack.c.bf16 %v373, %v373
      %v379 = vpack.c.bf16 %v375, %v374
      %v380 = vpack.c.bf16 %v376, %v376
      %381 = vst [vmem:[#allocation2] sm:$0xff] %v377
      %382 = vst [vmem:[#allocation2 + $0x8] sm:$0xf] %v378
      %383 = vst [vmem:[#allocation2 + $0xc] sm:$0xff] %v379
      %384 = vst [vmem:[#allocation2 + $0x14] sm:$0xf] %v380
      %386 = vrot.lane.b32.xlu0 %v331, 127
      %v387 = vpop.permute.xlu0 %386
      %v388 = vrot.slane %v387, 2
      %vm389 = vcmask 1039360
      %v390 = vsel %vm389, %v387, %v388
      %v392 = vmax.f32 %v330, %v390
      %v394 = vperm.slane %v392, 0
      %v395 = vperm.slane %v392, 2
      %v396 = vperm.slane %v392, 4
      %v400 = vpack.c.bf16 %v395, %v394
      %v401 = vpack.c.bf16 %v396, %v396
      %v404 = vunpack.c.l.b16 %v400
      %v405 = vunpack.c.h.b16 %v400
      %v406 = vunpack.c.l.b16 %v401
      %v407 = vpack.c.b16 %v404, %v404
      %v408 = vpack.c.b16 %v405, %v405
      %v409 = vpack.c.b16 %v406, %v406
      %v411 = vpack.i.b16 %v407, %v407
      %v413 = vperm.slane %v411, 0
      %v415 = vpack.i.b16 %v408, %v408
      %v417 = vperm.slane %v415, 0
      %v419 = vpack.i.b16 %v409, %v409
      %v421 = vperm.slane %v419, 0
      %v422 = vunpack.c.h.bf16 %v325
      %v423 = vunpack.c.h.bf16 %v327
      %v424 = vunpack.c.l.bf16 %v413
      %v425 = vunpack.c.l.bf16 %v417
      %v426 = vunpack.c.l.bf16 %v421
      %430 = vrot.lane.b32.xlu0 %v424, 1
      %v431 = vpop.permute.xlu0 %430
      %432 = vrot.lane.b32.xlu0 %v425, 1
      %v433 = vpop.permute.xlu0 %432
      %434 = vrot.lane.b32.xlu0 %v426, 1
      %v435 = vpop.permute.xlu0 %434
      %vm436 = vcmask 7168
      %v437 = vsel %vm436, %v431, %v433
      %v438 = vsel %vm436, %v433, %v435
      %v443 = vmul.f32 %v362, %v431
      %v444 = vmul.f32 %v363, %v437
      %v445 = vmul.f32 %v364, %v438
      %v446 = vmul.f32 %v422, %v435
      %v447 = vmul.f32 %v365, %v431
      %v448 = vmul.f32 %v366, %v437
      %v449 = vmul.f32 %v367, %v438
      %v450 = vmul.f32 %v423, %v435
      %v451 = vpack.c.bf16 %v444, %v443
      %v452 = vpack.c.bf16 %v446, %v445
      %v453 = vpack.c.bf16 %v448, %v447
      %v454 = vpack.c.bf16 %v450, %v449
      %459 = vrot.lane.b32.xlu0 %v451, 127
      %v460 = vpop.permute.xlu0 %459
      %461 = vrot.lane.b32.xlu0 %v452, 127
      %v462 = vpop.permute.xlu0 %461
      %463 = vrot.lane.b32.xlu0 %v453, 127
      %v464 = vpop.permute.xlu0 %463
      %465 = vrot.lane.b32.xlu0 %v454, 127
      %v466 = vpop.permute.xlu0 %465
      %v467 = vrot.slane %v460, 4
      %v468 = vrot.slane %v462, 4
      %v469 = vrot.slane %v464, 4
      %v470 = vrot.slane %v466, 4
      %vm471 = vcmask 1043456
      %v472 = vsel %vm471, %v467, %v468
      %vm473 = vcmask 1039360
      %v474 = vsel %vm473, %v460, %v472
      %v475 = vsel %vm473, %v462, %v468
      %v476 = vsel %vm471, %v469, %v470
      %v477 = vsel %vm473, %v464, %v476
      %v478 = vsel %vm473, %v466, %v470
      %483 = vst [vmem:[#allocation2 + $0x18] sm:$0xff] %v474
      %484 = vst [vmem:[#allocation2 + $0x20] sm:$0xf] %v475
      %485 = vst [vmem:[#allocation2 + $0x24] sm:$0xff] %v477
      %486 = vst [vmem:[#allocation2 + $0x2c] sm:$0xf] %v478
      %487 = vrot.lane.b32.xlu0 %v331, 126
      %v488 = vpop.permute.xlu0 %487
      %v489 = vrot.slane %v488, 2
      %vm490 = vcmask 1031168
      %v491 = vsel %vm490, %v488, %v489
      %v493 = vmax.f32 %v330, %v491
      %v495 = vperm.slane %v493, 0
      %v496 = vperm.slane %v493, 2
      %v497 = vperm.slane %v493, 4
      %v501 = vpack.c.bf16 %v496, %v495
      %v502 = vpack.c.bf16 %v497, %v497
      %v505 = vunpack.c.l.b16 %v501
      %v506 = vunpack.c.h.b16 %v501
      %v507 = vunpack.c.l.b16 %v502
      %v508 = vpack.c.b16 %v505, %v505
      %v509 = vpack.c.b16 %v506, %v506
      %v510 = vpack.c.b16 %v507, %v507
      %v512 = vpack.i.b16 %v508, %v508
      %v514 = vperm.slane %v512, 0
      %v516 = vpack.i.b16 %v509, %v509
      %v518 = vperm.slane %v516, 0
      %v520 = vpack.i.b16 %v510, %v510
      %v522 = vperm.slane %v520, 0
      %v523 = vunpack.c.l.bf16 %v514
      %v524 = vunpack.c.l.bf16 %v518
      %v525 = vunpack.c.l.bf16 %v522
      %529 = vrot.lane.b32.xlu0 %v523, 2
      %v530 = vpop.permute.xlu0 %529
      %531 = vrot.lane.b32.xlu0 %v524, 2
      %v532 = vpop.permute.xlu0 %531
      %533 = vrot.lane.b32.xlu0 %v525, 2
      %v534 = vpop.permute.xlu0 %533
      %vm535 = vcmask 15360
      %v536 = vsel %vm535, %v530, %v532
      %v537 = vsel %vm535, %v532, %v534
      %v542 = vmul.f32 %v362, %v530
      %v543 = vmul.f32 %v363, %v536
      %v544 = vmul.f32 %v364, %v537
      %v545 = vmul.f32 %v422, %v534
      %v546 = vmul.f32 %v365, %v530
      %v547 = vmul.f32 %v366, %v536
      %v548 = vmul.f32 %v367, %v537
      %v549 = vmul.f32 %v423, %v534
      %v550 = vpack.c.bf16 %v543, %v542
      %v551 = vpack.c.bf16 %v545, %v544
      %v552 = vpack.c.bf16 %v547, %v546
      %v553 = vpack.c.bf16 %v549, %v548
      %558 = vrot.lane.b32.xlu0 %v550, 126
      %v559 = vpop.permute.xlu0 %558
      %560 = vrot.lane.b32.xlu0 %v551, 126
      %v561 = vpop.permute.xlu0 %560
      %562 = vrot.lane.b32.xlu0 %v552, 126
      %v563 = vpop.permute.xlu0 %562
      %564 = vrot.lane.b32.xlu0 %v553, 126
      %v565 = vpop.permute.xlu0 %564
      %v566 = vrot.slane %v559, 4
      %v567 = vrot.slane %v561, 4
      %v568 = vrot.slane %v563, 4
      %v569 = vrot.slane %v565, 4
      %v570 = vsel %vm471, %v566, %v567
      %vm571 = vcmask 1031168
      %v572 = vsel %vm571, %v559, %v570
      %v573 = vsel %vm571, %v561, %v567
      %v574 = vsel %vm471, %v568, %v569
      %v575 = vsel %vm571, %v563, %v574
      %v576 = vsel %vm571, %v565, %v569
      %581 = vst [vmem:[#allocation2 + $0x30] sm:$0xff] %v572
      %582 = vst [vmem:[#allocation2 + $0x38] sm:$0xf] %v573
      %583 = vst [vmem:[#allocation2 + $0x3c] sm:$0xff] %v575
      %584 = vst [vmem:[#allocation2 + $0x44] sm:$0xf] %v576
      %585 = vrot.lane.b32.xlu0 %v331, 110
      %v586 = vpop.permute.xlu0 %585
      %v587 = vrot.slane %v586, 2
      %vm588 = vcmask 900096
      %v589 = vsel %vm588, %v586, %v587
      %v591 = vmax.f32 %v330, %v589
      %v593 = vperm.slane %v591, 0
      %v594 = vperm.slane %v591, 2
      %v595 = vperm.slane %v591, 4
      %v599 = vpack.c.bf16 %v594, %v593
      %v600 = vpack.c.bf16 %v595, %v595
      %v603 = vunpack.c.l.b16 %v599
      %v604 = vunpack.c.h.b16 %v599
      %v605 = vunpack.c.l.b16 %v600
      %v606 = vpack.c.b16 %v603, %v603
      %v607 = vpack.c.b16 %v604, %v604
      %v608 = vpack.c.b16 %v605, %v605
      %v610 = vpack.i.b16 %v606, %v606
      %v612 = vperm.slane %v610, 0
      %v614 = vpack.i.b16 %v607, %v607
      %v616 = vperm.slane %v614, 0
      %v618 = vpack.i.b16 %v608, %v608
      %v620 = vperm.slane %v618, 0
      %v621 = vunpack.c.l.bf16 %v612
      %v622 = vunpack.c.l.bf16 %v616
      %v623 = vunpack.c.l.bf16 %v620
      %627 = vrot.lane.b32.xlu0 %v621, 18
      %v628 = vpop.permute.xlu0 %627
      %629 = vrot.lane.b32.xlu0 %v622, 18
      %v630 = vpop.permute.xlu0 %629
      %631 = vrot.lane.b32.xlu0 %v623, 18
      %v632 = vpop.permute.xlu0 %631
      %vm633 = vcmask 146432
      %v634 = vsel %vm633, %v628, %v630
      %v635 = vsel %vm633, %v630, %v632
      %v640 = vmul.f32 %v362, %v628
      %v641 = vmul.f32 %v363, %v634
      %v642 = vmul.f32 %v364, %v635
      %v643 = vmul.f32 %v422, %v632
      %v644 = vmul.f32 %v365, %v628
      %v645 = vmul.f32 %v366, %v634
      %v646 = vmul.f32 %v367, %v635
      %v647 = vmul.f32 %v423, %v632
      %v648 = vpack.c.bf16 %v641, %v640
      %v649 = vpack.c.bf16 %v643, %v642
      %v650 = vpack.c.bf16 %v645, %v644
      %v651 = vpack.c.bf16 %v647, %v646
      %656 = vrot.lane.b32.xlu0 %v648, 110
      %v657 = vpop.permute.xlu0 %656
      %658 = vrot.lane.b32.xlu0 %v649, 110
      %v659 = vpop.permute.xlu0 %658
      %660 = vrot.lane.b32.xlu0 %v650, 110
      %v661 = vpop.permute.xlu0 %660
      %662 = vrot.lane.b32.xlu0 %v651, 110
      %v663 = vpop.permute.xlu0 %662
      %v664 = vrot.slane %v657, 4
      %v665 = vrot.slane %v659, 4
      %v666 = vrot.slane %v661, 4
      %v667 = vrot.slane %v663, 4
      %v668 = vsel %vm471, %v664, %v665
      %vm669 = vcmask 900096
      %v670 = vsel %vm669, %v657, %v668
      %v671 = vsel %vm669, %v659, %v665
      %v672 = vsel %vm471, %v666, %v667
      %v673 = vsel %vm669, %v661, %v672
      %v674 = vsel %vm669, %v663, %v667
      %679 = vst [vmem:[#allocation2 + $0x48] sm:$0xff] %v670
      %680 = vst [vmem:[#allocation2 + $0x50] sm:$0xf] %v671
      %681 = vst [vmem:[#allocation2 + $0x54] sm:$0xff] %v673
      %682 = vst [vmem:[#allocation2 + $0x5c] sm:$0xf] %v674
      %683 = vrot.lane.b32.xlu0 %v331, 109
      %v684 = vpop.permute.xlu0 %683
      %v685 = vrot.slane %v684, 2
      %vm686 = vcmask 891904
      %v687 = vsel %vm686, %v684, %v685
      %v689 = vmax.f32 %v330, %v687
      %v691 = vperm.slane %v689, 0
      %v692 = vperm.slane %v689, 2
      %v693 = vperm.slane %v689, 4
      %v697 = vpack.c.bf16 %v692, %v691
      %v698 = vpack.c.bf16 %v693, %v693
      %v701 = vunpack.c.l.b16 %v697
      %v702 = vunpack.c.h.b16 %v697
      %v703 = vunpack.c.l.b16 %v698
      %v704 = vpack.c.b16 %v701, %v701
      %v705 = vpack.c.b16 %v702, %v702
      %v706 = vpack.c.b16 %v703, %v703
      %v708 = vpack.i.b16 %v704, %v704
      %v710 = vperm.slane %v708, 0
      %v712 = vpack.i.b16 %v705, %v705
      %v714 = vperm.slane %v712, 0
      %v716 = vpack.i.b16 %v706, %v706
      %v718 = vperm.slane %v716, 0
      %v719 = vunpack.c.l.bf16 %v710
      %v720 = vunpack.c.l.bf16 %v714
      %v721 = vunpack.c.l.bf16 %v718
      %725 = vrot.lane.b32.xlu0 %v719, 19
      %v726 = vpop.permute.xlu0 %725
      %727 = vrot.lane.b32.xlu0 %v720, 19
      %v728 = vpop.permute.xlu0 %727
      %729 = vrot.lane.b32.xlu0 %v721, 19
      %v730 = vpop.permute.xlu0 %729
      %vm731 = vcmask 154624
      %v732 = vsel %vm731, %v726, %v728
      %v733 = vsel %vm731, %v728, %v730
      %v738 = vmul.f32 %v362, %v726
      %v739 = vmul.f32 %v363, %v732
      %v740 = vmul.f32 %v364, %v733
      %v741 = vmul.f32 %v422, %v730
      %v742 = vmul.f32 %v365, %v726
      %v743 = vmul.f32 %v366, %v732
      %v744 = vmul.f32 %v367, %v733
      %v745 = vmul.f32 %v423, %v730
      %v746 = vpack.c.bf16 %v739, %v738
      %v747 = vpack.c.bf16 %v741, %v740
      %v748 = vpack.c.bf16 %v743, %v742
      %v749 = vpack.c.bf16 %v745, %v744
      %754 = vrot.lane.b32.xlu0 %v746, 109
      %v755 = vpop.permute.xlu0 %754
      %756 = vrot.lane.b32.xlu0 %v747, 109
      %v757 = vpop.permute.xlu0 %756
      %758 = vrot.lane.b32.xlu0 %v748, 109
      %v759 = vpop.permute.xlu0 %758
      %760 = vrot.lane.b32.xlu0 %v749, 109
      %v761 = vpop.permute.xlu0 %760
      %v762 = vrot.slane %v755, 4
      %v763 = vrot.slane %v757, 4
      %v764 = vrot.slane %v759, 4
      %v765 = vrot.slane %v761, 4
      %v766 = vsel %vm471, %v762, %v763
      %vm767 = vcmask 891904
      %v768 = vsel %vm767, %v755, %v766
      %v769 = vsel %vm767, %v757, %v763
      %v770 = vsel %vm471, %v764, %v765
      %v771 = vsel %vm767, %v759, %v770
      %v772 = vsel %vm767, %v761, %v765
      %777 = vst [vmem:[#allocation2 + $0x60] sm:$0xff] %v768
      %778 = vst [vmem:[#allocation2 + $0x68] sm:$0xf] %v769
      %779 = vst [vmem:[#allocation2 + $0x6c] sm:$0xff] %v771
      %780 = vst [vmem:[#allocation2 + $0x74] sm:$0xf] %v772
      %781 = vrot.lane.b32.xlu0 %v331, 108
      %v782 = vpop.permute.xlu0 %781
      %v783 = vrot.slane %v782, 2
      %vm784 = vcmask 883712
      %v785 = vsel %vm784, %v782, %v783
      %v787 = vmax.f32 %v330, %v785
      %v789 = vperm.slane %v787, 0
      %v790 = vperm.slane %v787, 2
      %v791 = vperm.slane %v787, 4
      %v795 = vpack.c.bf16 %v790, %v789
      %v796 = vpack.c.bf16 %v791, %v791
      %v799 = vunpack.c.l.b16 %v795
      %v800 = vunpack.c.h.b16 %v795
      %v801 = vunpack.c.l.b16 %v796
      %v802 = vpack.c.b16 %v799, %v799
      %v803 = vpack.c.b16 %v800, %v800
      %v804 = vpack.c.b16 %v801, %v801
      %v806 = vpack.i.b16 %v802, %v802
      %v808 = vperm.slane %v806, 0
      %v810 = vpack.i.b16 %v803, %v803
      %v812 = vperm.slane %v810, 0
      %v814 = vpack.i.b16 %v804, %v804
      %v816 = vperm.slane %v814, 0
      %v817 = vunpack.c.l.bf16 %v808
      %v818 = vunpack.c.l.bf16 %v812
      %v819 = vunpack.c.l.bf16 %v816
      %823 = vrot.lane.b32.xlu0 %v817, 20
      %v824 = vpop.permute.xlu0 %823
      %825 = vrot.lane.b32.xlu0 %v818, 20
      %v826 = vpop.permute.xlu0 %825
      %827 = vrot.lane.b32.xlu0 %v819, 20
      %v828 = vpop.permute.xlu0 %827
      %vm829 = vcmask 162816
      %v830 = vsel %vm829, %v824, %v826
      %v831 = vsel %vm829, %v826, %v828
      %v836 = vmul.f32 %v362, %v824
      %v837 = vmul.f32 %v363, %v830
      %v838 = vmul.f32 %v364, %v831
      %v839 = vmul.f32 %v422, %v828
      %v840 = vmul.f32 %v365, %v824
      %v841 = vmul.f32 %v366, %v830
      %v842 = vmul.f32 %v367, %v831
      %v843 = vmul.f32 %v423, %v828
      %v844 = vpack.c.bf16 %v837, %v836
      %v845 = vpack.c.bf16 %v839, %v838
      %v846 = vpack.c.bf16 %v841, %v840
      %v847 = vpack.c.bf16 %v843, %v842
      %852 = vrot.lane.b32.xlu0 %v844, 108
      %v853 = vpop.permute.xlu0 %852
      %854 = vrot.lane.b32.xlu0 %v845, 108
      %v855 = vpop.permute.xlu0 %854
      %856 = vrot.lane.b32.xlu0 %v846, 108
      %v857 = vpop.permute.xlu0 %856
      %858 = vrot.lane.b32.xlu0 %v847, 108
      %v859 = vpop.permute.xlu0 %858
      %v860 = vrot.slane %v853, 4
      %v861 = vrot.slane %v855, 4
      %v862 = vrot.slane %v857, 4
      %v863 = vrot.slane %v859, 4
      %v864 = vsel %vm471, %v860, %v861
      %vm865 = vcmask 883712
      %v866 = vsel %vm865, %v853, %v864
      %v867 = vsel %vm865, %v855, %v861
      %v868 = vsel %vm471, %v862, %v863
      %v869 = vsel %vm865, %v857, %v868
      %v870 = vsel %vm865, %v859, %v863
      %875 = vst [vmem:[#allocation2 + $0x78] sm:$0xff] %v866
      %876 = vst [vmem:[#allocation2 + $0x80] sm:$0xf] %v867
      %877 = vst [vmem:[#allocation2 + $0x84] sm:$0xff] %v869
      %878 = vst [vmem:[#allocation2 + $0x8c] sm:$0xf] %v870
      %879 = vrot.lane.b32.xlu0 %v331, 92
      %v880 = vpop.permute.xlu0 %879
      %v881 = vrot.slane %v880, 2
      %vm882 = vcmask 752640
      %v883 = vsel %vm882, %v880, %v881
      %v885 = vmax.f32 %v330, %v883
      %v887 = vperm.slane %v885, 0
      %v888 = vperm.slane %v885, 2
      %v889 = vperm.slane %v885, 4
      %v893 = vpack.c.bf16 %v888, %v887
      %v894 = vpack.c.bf16 %v889, %v889
      %v897 = vunpack.c.l.b16 %v893
      %v898 = vunpack.c.h.b16 %v893
      %v899 = vunpack.c.l.b16 %v894
      %v900 = vpack.c.b16 %v897, %v897
      %v901 = vpack.c.b16 %v898, %v898
      %v902 = vpack.c.b16 %v899, %v899
      %v904 = vpack.i.b16 %v900, %v900
      %v906 = vperm.slane %v904, 0
      %v908 = vpack.i.b16 %v901, %v901
      %v910 = vperm.slane %v908, 0
      %v912 = vpack.i.b16 %v902, %v902
      %v914 = vperm.slane %v912, 0
      %v915 = vunpack.c.l.bf16 %v906
      %v916 = vunpack.c.l.bf16 %v910
      %v917 = vunpack.c.l.bf16 %v914
      %921 = vrot.lane.b32.xlu0 %v915, 36
      %v922 = vpop.permute.xlu0 %921
      %923 = vrot.lane.b32.xlu0 %v916, 36
      %v924 = vpop.permute.xlu0 %923
      %925 = vrot.lane.b32.xlu0 %v917, 36
      %v926 = vpop.permute.xlu0 %925
      %vm927 = vcmask 293888
      %v928 = vsel %vm927, %v922, %v924
      %v929 = vsel %vm927, %v924, %v926
      %v934 = vmul.f32 %v362, %v922
      %v935 = vmul.f32 %v363, %v928
      %v936 = vmul.f32 %v364, %v929
      %v937 = vmul.f32 %v422, %v926
      %v938 = vmul.f32 %v365, %v922
      %v939 = vmul.f32 %v366, %v928
      %v940 = vmul.f32 %v367, %v929
      %v941 = vmul.f32 %v423, %v926
      %v942 = vpack.c.bf16 %v935, %v934
      %v943 = vpack.c.bf16 %v937, %v936
      %v944 = vpack.c.bf16 %v939, %v938
      %v945 = vpack.c.bf16 %v941, %v940
      %950 = vrot.lane.b32.xlu0 %v942, 92
      %v951 = vpop.permute.xlu0 %950
      %952 = vrot.lane.b32.xlu0 %v943, 92
      %v953 = vpop.permute.xlu0 %952
      %954 = vrot.lane.b32.xlu0 %v944, 92
      %v955 = vpop.permute.xlu0 %954
      %956 = vrot.lane.b32.xlu0 %v945, 92
      %v957 = vpop.permute.xlu0 %956
      %v958 = vrot.slane %v951, 4
      %v959 = vrot.slane %v953, 4
      %v960 = vrot.slane %v955, 4
      %v961 = vrot.slane %v957, 4
      %v962 = vsel %vm471, %v958, %v959
      %vm963 = vcmask 752640
      %v964 = vsel %vm963, %v951, %v962
      %v965 = vsel %vm963, %v953, %v959
      %v966 = vsel %vm471, %v960, %v961
      %v967 = vsel %vm963, %v955, %v966
      %v968 = vsel %vm963, %v957, %v961
      %973 = vst [vmem:[#allocation2 + $0x90] sm:$0xff] %v964
      %974 = vst [vmem:[#allocation2 + $0x98] sm:$0xf] %v965
      %975 = vst [vmem:[#allocation2 + $0x9c] sm:$0xff] %v967
      %976 = vst [vmem:[#allocation2 + $0xa4] sm:$0xf] %v968
      %977 = vrot.lane.b32.xlu0 %v331, 91
      %v978 = vpop.permute.xlu0 %977
      %v979 = vrot.slane %v978, 2
      %vm980 = vcmask 744448
      %v981 = vsel %vm980, %v978, %v979
      %v983 = vmax.f32 %v330, %v981
      %v985 = vperm.slane %v983, 0
      %v986 = vperm.slane %v983, 2
      %v987 = vperm.slane %v983, 4
      %v991 = vpack.c.bf16 %v986, %v985
      %v992 = vpack.c.bf16 %v987, %v987
      %v995 = vunpack.c.l.b16 %v991
      %v996 = vunpack.c.h.b16 %v991
      %v997 = vunpack.c.l.b16 %v992
      %v998 = vpack.c.b16 %v995, %v995
      %v999 = vpack.c.b16 %v996, %v996
      %v1000 = vpack.c.b16 %v997, %v997
      %v1002 = vpack.i.b16 %v998, %v998
      %v1004 = vperm.slane %v1002, 0
      %v1006 = vpack.i.b16 %v999, %v999
      %v1008 = vperm.slane %v1006, 0
      %v1010 = vpack.i.b16 %v1000, %v1000
      %v1012 = vperm.slane %v1010, 0
      %v1013 = vunpack.c.l.bf16 %v1004
      %v1014 = vunpack.c.l.bf16 %v1008
      %v1015 = vunpack.c.l.bf16 %v1012
      %1019 = vrot.lane.b32.xlu0 %v1013, 37
      %v1020 = vpop.permute.xlu0 %1019
      %1021 = vrot.lane.b32.xlu0 %v1014, 37
      %v1022 = vpop.permute.xlu0 %1021
      %1023 = vrot.lane.b32.xlu0 %v1015, 37
      %v1024 = vpop.permute.xlu0 %1023
      %vm1025 = vcmask 302080
      %v1026 = vsel %vm1025, %v1020, %v1022
      %v1027 = vsel %vm1025, %v1022, %v1024
      %v1032 = vmul.f32 %v362, %v1020
      %v1033 = vmul.f32 %v363, %v1026
      %v1034 = vmul.f32 %v364, %v1027
      %v1035 = vmul.f32 %v422, %v1024
      %v1036 = vmul.f32 %v365, %v1020
      %v1037 = vmul.f32 %v366, %v1026
      %v1038 = vmul.f32 %v367, %v1027
      %v1039 = vmul.f32 %v423, %v1024
      %v1040 = vpack.c.bf16 %v1033, %v1032
      %v1041 = vpack.c.bf16 %v1035, %v1034
      %v1042 = vpack.c.bf16 %v1037, %v1036
      %v1043 = vpack.c.bf16 %v1039, %v1038
      %1048 = vrot.lane.b32.xlu0 %v1040, 91
      %v1049 = vpop.permute.xlu0 %1048
      %1050 = vrot.lane.b32.xlu0 %v1041, 91
      %v1051 = vpop.permute.xlu0 %1050
      %1052 = vrot.lane.b32.xlu0 %v1042, 91
      %v1053 = vpop.permute.xlu0 %1052
      %1054 = vrot.lane.b32.xlu0 %v1043, 91
      %v1055 = vpop.permute.xlu0 %1054
      %v1056 = vrot.slane %v1049, 4
      %v1057 = vrot.slane %v1051, 4
      %v1058 = vrot.slane %v1053, 4
      %v1059 = vrot.slane %v1055, 4
      %v1060 = vsel %vm471, %v1056, %v1057
      %vm1061 = vcmask 744448
      %v1062 = vsel %vm1061, %v1049, %v1060
      %v1063 = vsel %vm1061, %v1051, %v1057
      %v1064 = vsel %vm471, %v1058, %v1059
      %v1065 = vsel %vm1061, %v1053, %v1064
      %v1066 = vsel %vm1061, %v1055, %v1059
      %1071 = vst [vmem:[#allocation2 + $0xa8] sm:$0xff] %v1062
      %1072 = vst [vmem:[#allocation2 + $0xb0] sm:$0xf] %v1063
      %1073 = vst [vmem:[#allocation2 + $0xb4] sm:$0xff] %v1065
      %1074 = vst [vmem:[#allocation2 + $0xbc] sm:$0xf] %v1066
      %1075 = vrot.lane.b32.xlu0 %v331, 90
      %v1076 = vpop.permute.xlu0 %1075
      %v1077 = vrot.slane %v1076, 2
      %vm1078 = vcmask 736256
      %v1079 = vsel %vm1078, %v1076, %v1077
      %v1081 = vmax.f32 %v330, %v1079
      %v1083 = vperm.slane %v1081, 0
      %v1084 = vperm.slane %v1081, 2
      %v1085 = vperm.slane %v1081, 4
      %v1089 = vpack.c.bf16 %v1084, %v1083
      %v1090 = vpack.c.bf16 %v1085, %v1085
      %v1093 = vunpack.c.l.b16 %v1089
      %v1094 = vunpack.c.h.b16 %v1089
      %v1095 = vunpack.c.l.b16 %v1090
      %v1096 = vpack.c.b16 %v1093, %v1093
      %v1097 = vpack.c.b16 %v1094, %v1094
      %v1098 = vpack.c.b16 %v1095, %v1095
      %v1100 = vpack.i.b16 %v1096, %v1096
      %v1102 = vperm.slane %v1100, 0
      %v1104 = vpack.i.b16 %v1097, %v1097
      %v1106 = vperm.slane %v1104, 0
      %v1108 = vpack.i.b16 %v1098, %v1098
      %v1110 = vperm.slane %v1108, 0
      %v1111 = vunpack.c.l.bf16 %v1102
      %v1112 = vunpack.c.l.bf16 %v1106
      %v1113 = vunpack.c.l.bf16 %v1110
      %1117 = vrot.lane.b32.xlu0 %v1111, 38
      %v1118 = vpop.permute.xlu0 %1117
      %1119 = vrot.lane.b32.xlu0 %v1112, 38
      %v1120 = vpop.permute.xlu0 %1119
      %1121 = vrot.lane.b32.xlu0 %v1113, 38
      %v1122 = vpop.permute.xlu0 %1121
      %vm1123 = vcmask 310272
      %v1124 = vsel %vm1123, %v1118, %v1120
      %v1125 = vsel %vm1123, %v1120, %v1122
      %v1130 = vmul.f32 %v362, %v1118
      %v1131 = vmul.f32 %v363, %v1124
      %v1132 = vmul.f32 %v364, %v1125
      %v1133 = vmul.f32 %v422, %v1122
      %v1134 = vmul.f32 %v365, %v1118
      %v1135 = vmul.f32 %v366, %v1124
      %v1136 = vmul.f32 %v367, %v1125
      %v1137 = vmul.f32 %v423, %v1122
      %v1138 = vpack.c.bf16 %v1131, %v1130
      %v1139 = vpack.c.bf16 %v1133, %v1132
      %v1140 = vpack.c.bf16 %v1135, %v1134
      %v1141 = vpack.c.bf16 %v1137, %v1136
      %1146 = vrot.lane.b32.xlu0 %v1138, 90
      %v1147 = vpop.permute.xlu0 %1146
      %1148 = vrot.lane.b32.xlu0 %v1139, 90
      %v1149 = vpop.permute.xlu0 %1148
      %1150 = vrot.lane.b32.xlu0 %v1140, 90
      %v1151 = vpop.permute.xlu0 %1150
      %1152 = vrot.lane.b32.xlu0 %v1141, 90
      %v1153 = vpop.permute.xlu0 %1152
      %v1154 = vrot.slane %v1147, 4
      %v1155 = vrot.slane %v1149, 4
      %v1156 = vrot.slane %v1151, 4
      %v1157 = vrot.slane %v1153, 4
      %v1158 = vsel %vm471, %v1154, %v1155
      %vm1159 = vcmask 736256
      %v1160 = vsel %vm1159, %v1147, %v1158
      %v1161 = vsel %vm1159, %v1149, %v1155
      %v1162 = vsel %vm471, %v1156, %v1157
      %v1163 = vsel %vm1159, %v1151, %v1162
      %v1164 = vsel %vm1159, %v1153, %v1157
      %1169 = vst [vmem:[#allocation2 + $0xc0] sm:$0xff] %v1160
      %1170 = vst [vmem:[#allocation2 + $0xc8] sm:$0xf] %v1161
      %1171 = vst [vmem:[#allocation2 + $0xcc] sm:$0xff] %v1163
      %1172 = vst [vmem:[#allocation2 + $0xd4] sm:$0xf] %v1164
      %v1173 = vld [vmem:[%s3] sm:$0xff]
      %v1174 = vld [vmem:[%s3 + $0x8] sm:$0xff]
      %v1175 = vld [vmem:[#allocation2] sm:$0xff]
      %v1176 = vld [vmem:[#allocation2 + $0x8] sm:$0xf]
      %v1177 = vld [vmem:[#allocation2 + $0xc] sm:$0xff]
      %v1178 = vld [vmem:[#allocation2 + $0x14] sm:$0xf]
      %v1179 = vld [vmem:[#allocation2 + $0x18] sm:$0xff]
      %v1180 = vld [vmem:[#allocation2 + $0x20] sm:$0xf]
      %v1181 = vld [vmem:[#allocation2 + $0x24] sm:$0xff]
      %v1182 = vld [vmem:[#allocation2 + $0x2c] sm:$0xf]
      %v1183 = vld [vmem:[#allocation2 + $0x30] sm:$0xff]
      %v1184 = vld [vmem:[#allocation2 + $0x38] sm:$0xf]
      %v1185 = vld [vmem:[#allocation2 + $0x3c] sm:$0xff]
      %v1186 = vld [vmem:[#allocation2 + $0x44] sm:$0xf]
      %v1187 = vld [vmem:[#allocation2 + $0x48] sm:$0xff]
      %v1188 = vld [vmem:[#allocation2 + $0x50] sm:$0xf]
      %v1189 = vld [vmem:[#allocation2 + $0x54] sm:$0xff]
      %v1190 = vld [vmem:[#allocation2 + $0x5c] sm:$0xf]
      %v1191 = vld [vmem:[#allocation2 + $0x60] sm:$0xff]
      %v1192 = vld [vmem:[#allocation2 + $0x68] sm:$0xf]
      %v1193 = vld [vmem:[#allocation2 + $0x6c] sm:$0xff]
      %v1194 = vld [vmem:[#allocation2 + $0x74] sm:$0xf]
      %v1195 = vld [vmem:[#allocation2 + $0x78] sm:$0xff]
      %v1196 = vld [vmem:[#allocation2 + $0x80] sm:$0xf]
      %v1197 = vld [vmem:[#allocation2 + $0x84] sm:$0xff]
      %v1198 = vld [vmem:[#allocation2 + $0x8c] sm:$0xf]
      %v1199 = vld [vmem:[#allocation2 + $0x90] sm:$0xff]
      %v1200 = vld [vmem:[#allocation2 + $0x98] sm:$0xf]
      %v1201 = vld [vmem:[#allocation2 + $0x9c] sm:$0xff]
      %v1202 = vld [vmem:[#allocation2 + $0xa4] sm:$0xf]
      %v1203 = vld [vmem:[#allocation2 + $0xa8] sm:$0xff]
      %v1204 = vld [vmem:[#allocation2 + $0xb0] sm:$0xf]
      %v1205 = vld [vmem:[#allocation2 + $0xb4] sm:$0xff]
      %v1206 = vld [vmem:[#allocation2 + $0xbc] sm:$0xf]
      %v1207 = vld [vmem:[#allocation2 + $0xc0] sm:$0xff]
      %v1208 = vld [vmem:[#allocation2 + $0xc8] sm:$0xf]
      %v1209 = vld [vmem:[#allocation2 + $0xcc] sm:$0xff]
      %v1210 = vld [vmem:[#allocation2 + $0xd4] sm:$0xf]
      %v1211 = vld [vmem:[%s4] sm:$0xff]
      %v1212 = vld [vmem:[%s4 + $0x8] sm:$0xff]
      %1214 = vset.pattern.permute.xlu0 0
      %1215 = vperm.xlu0 %1214, %v1211
      %v1216 = vpop.permute.xlu0 %1215
      %1219 = vset.pattern.permute.xlu0 0
      %1220 = vperm.xlu0 %1219, %v1212
      %v1221 = vpop.permute.xlu0 %1220
      %v1225 = vunpack.c.l.b16 %v1173
      %v1226 = vunpack.c.h.b16 %v1173
      %v1227 = vunpack.c.l.b16 %v1174
      %v1228 = vunpack.c.h.b16 %v1174
      %v1229 = vpack.c.b16 %v1227, %v1225
      %v1230 = vpack.c.b16 %v1228, %v1226
      %v1268 = vunpack.c.l.b16 %v1175
      %v1269 = vunpack.c.h.b16 %v1175
      %v1270 = vunpack.c.l.b16 %v1176
      %v1271 = vunpack.c.l.b16 %v1177
      %v1272 = vunpack.c.h.b16 %v1177
      %v1273 = vunpack.c.l.b16 %v1178
      %v1274 = vunpack.c.l.b16 %v1179
      %v1275 = vunpack.c.h.b16 %v1179
      %v1276 = vunpack.c.l.b16 %v1180
      %v1277 = vunpack.c.l.b16 %v1181
      %v1278 = vunpack.c.h.b16 %v1181
      %v1279 = vunpack.c.l.b16 %v1182
      %v1280 = vunpack.c.l.b16 %v1183
      %v1281 = vunpack.c.h.b16 %v1183
      %v1282 = vunpack.c.l.b16 %v1184
      %v1283 = vunpack.c.l.b16 %v1185
      %v1284 = vunpack.c.h.b16 %v1185
      %v1285 = vunpack.c.l.b16 %v1186
      %v1286 = vunpack.c.l.b16 %v1187
      %v1287 = vunpack.c.h.b16 %v1187
      %v1288 = vunpack.c.l.b16 %v1188
      %v1289 = vunpack.c.l.b16 %v1189
      %v1290 = vunpack.c.h.b16 %v1189
      %v1291 = vunpack.c.l.b16 %v1190
      %v1292 = vunpack.c.l.b16 %v1191
      %v1293 = vunpack.c.h.b16 %v1191
      %v1294 = vunpack.c.l.b16 %v1192
      %v1295 = vunpack.c.l.b16 %v1193
      %v1296 = vunpack.c.h.b16 %v1193
      %v1297 = vunpack.c.l.b16 %v1194
      %v1298 = vunpack.c.l.b16 %v1195
      %v1299 = vunpack.c.h.b16 %v1195
      %v1300 = vunpack.c.l.b16 %v1196
      %v1301 = vunpack.c.l.b16 %v1197
      %v1302 = vunpack.c.h.b16 %v1197
      %v1303 = vunpack.c.l.b16 %v1198
      %v1304 = vunpack.c.l.b16 %v1199
      %v1305 = vunpack.c.h.b16 %v1199
      %v1306 = vunpack.c.l.b16 %v1200
      %v1307 = vunpack.c.l.b16 %v1201
      %v1308 = vunpack.c.h.b16 %v1201
      %v1309 = vunpack.c.l.b16 %v1202
      %v1310 = vunpack.c.l.b16 %v1203
      %v1311 = vunpack.c.h.b16 %v1203
      %v1312 = vunpack.c.l.b16 %v1204
      %v1313 = vunpack.c.l.b16 %v1205
      %v1314 = vunpack.c.h.b16 %v1205
      %v1315 = vunpack.c.l.b16 %v1206
      %v1316 = vunpack.c.l.b16 %v1207
      %v1317 = vunpack.c.h.b16 %v1207
      %v1318 = vunpack.c.l.b16 %v1208
      %v1319 = vunpack.c.l.b16 %v1209
      %v1320 = vunpack.c.h.b16 %v1209
      %v1321 = vunpack.c.l.b16 %v1210
      %v1322 = vpack.c.b16 %v1271, %v1268
      %v1323 = vpack.c.b16 %v1272, %v1269
      %v1324 = vpack.c.b16 %v1273, %v1270
      %v1325 = vpack.c.b16 %v1277, %v1274
      %v1326 = vpack.c.b16 %v1278, %v1275
      %v1327 = vpack.c.b16 %v1279, %v1276
      %v1328 = vpack.c.b16 %v1283, %v1280
      %v1329 = vpack.c.b16 %v1284, %v1281
      %v1330 = vpack.c.b16 %v1285, %v1282
      %v1331 = vpack.c.b16 %v1289, %v1286
      %v1332 = vpack.c.b16 %v1290, %v1287
      %v1333 = vpack.c.b16 %v1291, %v1288
      %v1334 = vpack.c.b16 %v1295, %v1292
      %v1335 = vpack.c.b16 %v1296, %v1293
      %v1336 = vpack.c.b16 %v1297, %v1294
      %v1337 = vpack.c.b16 %v1301, %v1298
      %v1338 = vpack.c.b16 %v1302, %v1299
      %v1339 = vpack.c.b16 %v1303, %v1300
      %v1340 = vpack.c.b16 %v1307, %v1304
      %v1341 = vpack.c.b16 %v1308, %v1305
      %v1342 = vpack.c.b16 %v1309, %v1306
      %v1343 = vpack.c.b16 %v1313, %v1310
      %v1344 = vpack.c.b16 %v1314, %v1311
      %v1345 = vpack.c.b16 %v1315, %v1312
      %v1346 = vpack.c.b16 %v1319, %v1316
      %v1347 = vpack.c.b16 %v1320, %v1317
      %v1348 = vpack.c.b16 %v1321, %v1318
      %vm1376 = vcmask 130048
      %v1378 = vsel %vm1376, %v1230, 0
      %1380 = vmatpush.bf16.msra.mxu0 %v1343
      %1381 = vmatpush.bf16.msra.mxu0 %v1340
      %1382 = vmatpush.bf16.msra.mxu0 %v1337
      %1383 = vmatpush.bf16.msra.mxu0 %v1334
      %1384 = vmatpush.bf16.msra.mxu0 %v1331
      %1385 = vmatpush.bf16.msra.mxu0 %v1328
      %1386 = vmatpush.bf16.msra.mxu0 %v1325
      %1387 = vmatpush.bf16.msra.mxu0 %v1322
      %1388 = vmatmul.bf16.gmra.mxu0 %v1229
      %v1389 = vpop.f32.mrf.mxu0
      %v1390 = vadd.f32 %v1216, %v1389
      %v1391 = vpop.f32.mrf.mxu0
      %v1392 = vadd.f32 %v1221, %v1391
      %1393 = vdwg.mxu0
      %1394 = vmatpush.bf16.msra.mxu0 0
      %1395 = vmatpush.bf16.msra.mxu0 0
      %1396 = vmatpush.bf16.msra.mxu0 0
      %1397 = vmatpush.bf16.msra.mxu0 0
      %1398 = vmatpush.bf16.msra.mxu0 0
      %1399 = vmatpush.bf16.msra.mxu0 0
      %1400 = vmatpush.bf16.msra.mxu0 0
      %1401 = vmatpush.bf16.msra.mxu0 %v1346
      %1402 = vmatmul.bf16.gmra.mxu0 %v1378
      %v1403 = vpop.f32.mrf.mxu0
      %v1404 = vadd.f32 %v1390, %v1403
      %v1405 = vpop.f32.mrf.mxu0
      %v1406 = vadd.f32 %v1392, %v1405
      %1407 = vdwg.mxu0
      %1408 = vmatpush.bf16.msra.mxu0 %v1344
      %1409 = vmatpush.bf16.msra.mxu0 %v1341
      %1410 = vmatpush.bf16.msra.mxu0 %v1338
      %1411 = vmatpush.bf16.msra.mxu0 %v1335
      %1412 = vmatpush.bf16.msra.mxu0 %v1332
      %1413 = vmatpush.bf16.msra.mxu0 %v1329
      %1414 = vmatpush.bf16.msra.mxu0 %v1326
      %1415 = vmatpush.bf16.msra.mxu0 %v1323
      %1416 = vmatmul.bf16.gmra.mxu0 %v1229
      %v1417 = vpop.f32.mrf.mxu0
      %v1418 = vadd.f32 %v1216, %v1417
      %v1419 = vpop.f32.mrf.mxu0
      %v1420 = vadd.f32 %v1221, %v1419
      %1421 = vdwg.mxu0
      %1422 = vmatpush.bf16.msra.mxu0 0
      %1423 = vmatpush.bf16.msra.mxu0 0
      %1424 = vmatpush.bf16.msra.mxu0 0
      %1425 = vmatpush.bf16.msra.mxu0 0
      %1426 = vmatpush.bf16.msra.mxu0 0
      %1427 = vmatpush.bf16.msra.mxu0 0
      %1428 = vmatpush.bf16.msra.mxu0 0
      %1429 = vmatpush.bf16.msra.mxu0 %v1347
      %1430 = vmatmul.bf16.gmra.mxu0 %v1378
      %v1431 = vpop.f32.mrf.mxu0
      %v1432 = vadd.f32 %v1418, %v1431
      %v1433 = vpop.f32.mrf.mxu0
      %v1434 = vadd.f32 %v1420, %v1433
      %1435 = vdwg.mxu0
      %1436 = vmatpush.bf16.msra.mxu0 %v1345
      %1437 = vmatpush.bf16.msra.mxu0 %v1342
      %1438 = vmatpush.bf16.msra.mxu0 %v1339
      %1439 = vmatpush.bf16.msra.mxu0 %v1336
      %1440 = vmatpush.bf16.msra.mxu0 %v1333
      %1441 = vmatpush.bf16.msra.mxu0 %v1330
      %1442 = vmatpush.bf16.msra.mxu0 %v1327
      %1443 = vmatpush.bf16.msra.mxu0 %v1324
      %1444 = vmatmul.bf16.gmra.mxu0 %v1229
      %v1445 = vpop.f32.mrf.mxu0
      %v1446 = vadd.f32 %v1216, %v1445
      %v1447 = vpop.f32.mrf.mxu0
      %v1448 = vadd.f32 %v1221, %v1447
      %1449 = vdwg.mxu0
      %1450 = vmatpush.bf16.msra.mxu0 0
      %1451 = vmatpush.bf16.msra.mxu0 0
      %1452 = vmatpush.bf16.msra.mxu0 0
      %1453 = vmatpush.bf16.msra.mxu0 0
      %1454 = vmatpush.bf16.msra.mxu0 0
      %1455 = vmatpush.bf16.msra.mxu0 0
      %1456 = vmatpush.bf16.msra.mxu0 0
      %1457 = vmatpush.bf16.msra.mxu0 %v1348
      %1458 = vmatmul.bf16.gmra.mxu0 %v1378
      %v1459 = vpop.f32.mrf.mxu0
      %v1460 = vadd.f32 %v1446, %v1459
      %v1461 = vpop.f32.mrf.mxu0
      %v1462 = vadd.f32 %v1448, %v1461
      %1463 = vdwg.mxu0
      %1464 = vst [vmem:[%s322] sm:$0xff] %v1404
      %1465 = vst [vmem:[%s322 + $0x8] sm:$0xff] %v1432
      %1466 = vst [vmem:[%s322 + $0x10] sm:$0xff] %v1460
      %1467 = vst [vmem:[%s322 + $0x18] sm:$0xff] %v1406
      %1468 = vst [vmem:[%s322 + $0x20] sm:$0xff] %v1434
      %1469 = vst [vmem:[%s322 + $0x28] sm:$0xff] %v1462
      %p1470 = scmp.lt.s32.totalorder %s20, 1
      %s1471 = scalar_select %p1470, %s20, 1
      %p1472 = scmp.lt.s32.totalorder %s21, 0
      %s1473 = scalar_select %p1472, %s21, 0
      %s1474 = smul.addr %s1473, 6
      %s1475 = smul.addr %s1471, 6
      %s1476 = sadd.s32 %s1474, %s1475
      %s1477 = smul.addr %s1476, 8
      %s1478 = scalar_lea.vmem %s5, %s1477
      // Predicated region
      $region41: #{_lambda_.1} parent=39 // pred_check
        %p1479 = pneg %p174
      $region42: #{_lambda_.1} parent=39 // pred_check_branch
        %1481 = sbr.rel (%p1479) target = $region44
      $region43: #{_lambda_.1} parent=39 // pred_region
        _
      $region44: #{_lambda_.1} parent=39 // pred_fallthru
        _
    $region40: #{_lambda_.1} parent=5 // pred_fallthru
      _
    %p1482 = scmp.le.s32.totalorder 2, %s11
    // Predicated region
    $region45: #{_lambda_.1} parent=5 // pred_check
      %p1483 = pneg %p1482
    $region46: #{_lambda_.1} parent=5 // pred_check_branch
      %1485 = sbr.rel (%p1483) target = $region48
    $region47: #{_lambda_.1} parent=5 // pred_region
      %s1486 = ssub.s32 %s11, 2
      // Predicated region
      $region49: #{_lambda_.1} parent=47 // pred_check
        %p1487 = pneg %p180
      $region50: #{_lambda_.1} parent=47 // pred_check_branch
        %1489 = sbr.rel (%p1487) target = $region52
      $region51: #{_lambda_.1} parent=47 // pred_region
        %p1490 = scmp.lt.s32.totalorder %s22, 1
        %s1491 = scalar_select %p1490, %s22, 1
        %p1492 = scmp.lt.s32.totalorder %s23, 0
        %s1493 = scalar_select %p1492, %s23, 0
        %s1494 = smul.addr %s1493, 6
        %s1495 = smul.addr %s1491, 6
        %s1496 = sadd.s32 %s1494, %s1495
        %s1497 = smul.addr %s1496, 8
        %s1498 = scalar_lea.vmem %s5, %s1497
      $region52: #{_lambda_.1} parent=47 // pred_fallthru
        _
    $region48: #{_lambda_.1} parent=5 // pred_fallthru
      _
  $region6: #{_lambda_.1} parent=0 // loop_footer
    %s15 = sadd.s32 1, %s11
  $region7: #{_lambda_.1} parent=0 // loop_footer_branch
    %10 = sbr.rel target = $region3
  $region8: #{_lambda_.1} parent=0 // loop_exit
    _

</llo_original>
